<compile_context>
chip_gen: v7x
topology: tpu7x:2x2x1
jax: 0.10.0
libtpu: 0.0.40
codegen_flags: <defaults>
</compile_context>

<pallas_src>
import functools

import jax
import jax.numpy as jnp
from jax import lax
from jax.experimental import pallas as pl
from jax.experimental.pallas import tpu as pltpu


# ---------------------------------------------------------------------------
# kernel
# ---------------------------------------------------------------------------
def _mask_head_kernel(x_ref,
                      w1_ref, s1_ref, t1_ref,
                      w2_ref, s2_ref, t2_ref,
                      w3_ref, s3_ref, t3_ref,
                      w4_ref, b4_ref,
                      o_ref, *, H):
    """x_ref: (NB*H, W*C) lane-dense feature rows; o_ref: (NB*H, W*num_classes)."""
    NH = x_ref.shape[0]

    # Row (sublane) height index within its image; used to zero the rows a
    # +/-1 row shift pulls in from outside the image (= conv zero padding).
    h = lax.broadcasted_iota(jnp.int32, (NH, 1), 0) % H
    not_top = h != 0          # row h-1 exists
    not_bot = h != (H - 1)    # row h+1 exists

    def conv3x3_bn_relu(x, w_ref, s_ref, t_ref):
        # x[h-1] / x[h+1] via XLU sublane rotates + border masks (zero padding).
        x_prev = jnp.where(not_top, pltpu.roll(x, shift=1, axis=0), 0.0)       # x[h-1]
        x_next = jnp.where(not_bot, pltpu.roll(x, shift=NH - 1, axis=0), 0.0)  # x[h+1]
        # One banded (W*C, W*C) matmul per ky tap; accumulator seeded by tap 0.
        acc = jnp.dot(x_prev, w_ref[0], preferred_element_type=jnp.float32)
        acc = acc + jnp.dot(x, w_ref[1], preferred_element_type=jnp.float32)
        acc = acc + jnp.dot(x_next, w_ref[2], preferred_element_type=jnp.float32)
        # Folded BatchNorm (inference) + ReLU.
        return jnp.maximum(acc * s_ref[...] + t_ref[...], 0.0)

    x = x_ref[...].astype(jnp.float32)
    x = conv3x3_bn_relu(x, w1_ref, s1_ref, t1_ref)
    x = conv3x3_bn_relu(x, w2_ref, s2_ref, t2_ref)
    x = conv3x3_bn_relu(x, w3_ref, s3_ref, t3_ref)

    # Final 1x1 conv (block-diagonal matmul) + bias + sigmoid.
    logits = jnp.dot(x, w4_ref[...], preferred_element_type=jnp.float32) + b4_ref[...]
    o_ref[...] = jax.nn.sigmoid(logits).astype(o_ref.dtype)


# ---------------------------------------------------------------------------
# wrapper-side weight repacking (done once per call, outside the kernel)
# ---------------------------------------------------------------------------
def _band_weight(w_hwio, W):
    """(3, 3, C, C) HWIO 3x3 weight -> (3, W*C, W*C) row-banded matrices.

    Wb[ky, win*C + ci, wout*C + co] = w_hwio[ky, win - wout + 1, ci, co]
    for |win - wout| <= 1, else 0.  Width zero-padding is implicit in the band.
    """
    delta = jnp.arange(W)[:, None] - jnp.arange(W)[None, :]        # win - wout
    valid = (jnp.abs(delta) <= 1).astype(w_hwio.dtype)             # (W, W)
    tap = jnp.clip(delta + 1, 0, 2)                                # kx index
    blocks = w_hwio[:, tap] * valid[None, :, :, None, None]        # (3, W, W, C, C)
    C = w_hwio.shape[-2]
    return blocks.transpose(0, 1, 3, 2, 4).reshape(3, W * C, W * C)


def _block_diag_1x1(w, W):
    """(C, NC) 1x1 conv weight -> (W*C, W*NC) block-diagonal matrix."""
    C, NC = w.shape
    eye = jnp.eye(W, dtype=w.dtype)
    return (eye[:, None, :, None] * w[None, :, None, :]).reshape(W * C, W * NC)


# ---------------------------------------------------------------------------
# forward
# ---------------------------------------------------------------------------
def mask_head_forward(x_nchw, params, *, batch_block=None):
    """x_nchw: (N, C, H, W) float32.  Returns (N, num_classes, H, W) float32."""
    (w1, s1, t1), (w2, s2, t2), (w3, s3, t3), (w4, b4) = params
    N, C, H, W = x_nchw.shape
    NC = w4.shape[-1]
    WC, WN = W * C, W * NC

    if batch_block is None:
        batch_block = N          # whole batch in a single grid step at demo sizes
    assert N % batch_block == 0
    NBH = batch_block * H

    # Repack to kernel layout: rows are (image, height) pairs, lanes are W*C.
    xk = jnp.transpose(x_nchw, (0, 2, 3, 1)).reshape(N * H, WC)
    wb1, wb2, wb3 = (_band_weight(w, W) for w in (w1, w2, w3))
    s1k, s2k, s3k = (jnp.tile(s, W).reshape(1, WC) for s in (s1, s2, s3))
    t1k, t2k, t3k = (jnp.tile(t, W).reshape(1, WC) for t in (t1, t2, t3))
    w4b = _block_diag_1x1(w4, W)
    b4k = jnp.tile(b4, W).reshape(1, WN)

    full = lambda shape: pl.BlockSpec(shape, lambda i: (0,) * len(shape))
    kernel = functools.partial(_mask_head_kernel, H=H)

    out_flat = pl.pallas_call(
        kernel,
        out_shape=jax.ShapeDtypeStruct((N * H, WN), jnp.float32),
        grid_spec=pltpu.PrefetchScalarGridSpec(
            num_scalar_prefetch=0,
            grid=(N // batch_block,),
            in_specs=[
                pl.BlockSpec((NBH, WC), lambda i: (i, 0)),          # x rows
                full((3, WC, WC)), full((1, WC)), full((1, WC)),    # layer 1
                full((3, WC, WC)), full((1, WC)), full((1, WC)),    # layer 2
                full((3, WC, WC)), full((1, WC)), full((1, WC)),    # layer 3
                full((WC, WN)), full((1, WN)),                      # 1x1 conv
            ],
            out_specs=pl.BlockSpec((NBH, WN), lambda i: (i, 0)),
        ),
        compiler_params=pltpu.CompilerParams(
            # images are independent -> batch grid axis can shard across TCs (v7x)
            dimension_semantics=("parallel",)),
    )(xk, wb1, s1k, t1k, wb2, s2k, t2k, wb3, s3k, t3k, w4b, b4k)

    out = out_flat.reshape(N, H, W, NC)
    return jnp.transpose(out, (0, 3, 1, 2))      # back to NCHW


# ---------------------------------------------------------------------------
# pure-JAX reference & synthetic parameters
# ---------------------------------------------------------------------------
def reference_forward(x_nchw, params):
    (w1, s1, t1), (w2, s2, t2), (w3, s3, t3), (w4, b4) = params
    x = jnp.transpose(x_nchw, (0, 2, 3, 1))      # NHWC
    for w, s, t in ((w1, s1, t1), (w2, s2, t2), (w3, s3, t3)):
        x = lax.conv_general_dilated(
            x, w, window_strides=(1, 1), padding='SAME',
            dimension_numbers=('NHWC', 'HWIO', 'NHWC'))
        x = jnp.maximum(x * s + t, 0.0)
    logits = jnp.einsum('nhwc,cd->nhwd', x, w4) + b4
    return jnp.transpose(jax.nn.sigmoid(logits), (0, 3, 1, 2))


def make_params(key, channel, num_classes, eps=1e-5):
    """Deterministic synthetic parameters; BatchNorm folded to scale/shift."""
    ks = jax.random.split(key, 17)
    layers = []
    for i in range(3):
        kw, kg, kb, km, kv = ks[5 * i:5 * i + 5]
        w = 0.1 * jax.random.normal(kw, (3, 3, channel, channel), jnp.float32)  # HWIO
        gamma = 1.0 + 0.1 * jax.random.normal(kg, (channel,), jnp.float32)
        beta = 0.1 * jax.random.normal(kb, (channel,), jnp.float32)
        mean = 0.1 * jax.random.normal(km, (channel,), jnp.float32)
        var = jnp.abs(jax.random.normal(kv, (channel,), jnp.float32)) + 0.5
        scale = gamma / jnp.sqrt(var + eps)
        shift = beta - mean * scale
        layers.append((w, scale, shift))
    w4 = 0.1 * jax.random.normal(ks[15], (channel, num_classes), jnp.float32)
    b4 = 0.1 * jax.random.normal(ks[16], (num_classes,), jnp.float32)
    return (*layers, (w4, b4))


if __name__ == "__main__":
    N, C, H, W = 2, 8, 16, 16          # NCHW; W * C == 128 -> lane-dense rows
    num_classes = 2

    kx, kp = jax.random.split(jax.random.PRNGKey(0))
    x = jax.random.normal(kx, (N, C, H, W), jnp.float32)
    params = make_params(kp, C, num_classes)

    out = jax.block_until_ready(mask_head_forward(x, params))
    ref = reference_forward(x, params)

    assert out.shape == (N, num_classes, H, W)
    max_err = float(jnp.max(jnp.abs(out - ref)))
    assert jnp.allclose(out, ref, atol=1e-3, rtol=1e-3), max_err

    print("KERNEL_OK")
</pallas_src>

<mosaic_0001>
module attributes {stable_mosaic.version = 11 : i64} {
  func.func @_mask_head_kernel(%arg0: i32, %arg1: memref<32x128xf32, #tpu.memory_space<vmem>>, %arg2: memref<3x128x128xf32, #tpu.memory_space<vmem>>, %arg3: memref<1x128xf32, #tpu.memory_space<vmem>>, %arg4: memref<1x128xf32, #tpu.memory_space<vmem>>, %arg5: memref<3x128x128xf32, #tpu.memory_space<vmem>>, %arg6: memref<1x128xf32, #tpu.memory_space<vmem>>, %arg7: memref<1x128xf32, #tpu.memory_space<vmem>>, %arg8: memref<3x128x128xf32, #tpu.memory_space<vmem>>, %arg9: memref<1x128xf32, #tpu.memory_space<vmem>>, %arg10: memref<1x128xf32, #tpu.memory_space<vmem>>, %arg11: memref<128x32xf32, #tpu.memory_space<vmem>>, %arg12: memref<1x32xf32, #tpu.memory_space<vmem>>, %arg13: memref<32x32xf32, #tpu.memory_space<vmem>>) attributes {dimension_semantics = [#tpu.dimension_semantics<parallel>], iteration_bounds = array<i64: 1>, scalar_prefetch = 0 : i64, scratch_operands = 0 : i64, tpu.core_type = #tpu.core_type<tc>, window_params = [{transform_indices = @transform_0, window_bounds = array<i64: 32, 128>}, {pipeline_mode = #tpu.pipeline_mode<synchronous>, transform_indices = @transform_1, window_bounds = array<i64: 3, 128, 128>}, {pipeline_mode = #tpu.pipeline_mode<synchronous>, transform_indices = @transform_2, window_bounds = array<i64: 1, 128>}, {pipeline_mode = #tpu.pipeline_mode<synchronous>, transform_indices = @transform_3, window_bounds = array<i64: 1, 128>}, {pipeline_mode = #tpu.pipeline_mode<synchronous>, transform_indices = @transform_4, window_bounds = array<i64: 3, 128, 128>}, {pipeline_mode = #tpu.pipeline_mode<synchronous>, transform_indices = @transform_5, window_bounds = array<i64: 1, 128>}, {pipeline_mode = #tpu.pipeline_mode<synchronous>, transform_indices = @transform_6, window_bounds = array<i64: 1, 128>}, {pipeline_mode = #tpu.pipeline_mode<synchronous>, transform_indices = @transform_7, window_bounds = array<i64: 3, 128, 128>}, {pipeline_mode = #tpu.pipeline_mode<synchronous>, transform_indices = @transform_8, window_bounds = array<i64: 1, 128>}, {pipeline_mode = #tpu.pipeline_mode<synchronous>, transform_indices = @transform_9, window_bounds = array<i64: 1, 128>}, {pipeline_mode = #tpu.pipeline_mode<synchronous>, transform_indices = @transform_10, window_bounds = array<i64: 128, 32>}, {pipeline_mode = #tpu.pipeline_mode<synchronous>, transform_indices = @transform_11, window_bounds = array<i64: 1, 32>}, {transform_indices = @transform_12, window_bounds = array<i64: 32, 32>}]} {
    %0 = tpu.iota {dimensions = array<i32: 0>} : vector<32x1xi32>
    %c16_i32 = arith.constant 16 : i32
    %c0_i32 = arith.constant 0 : i32
    %1 = arith.cmpi eq, %c16_i32, %c0_i32 : i32
    %c1_i32 = arith.constant 1 : i32
    %2 = arith.select %1, %c1_i32, %c16_i32 : i32
    %3 = vector.broadcast %2 : i32 to vector<32x1xi32>
    %4 = arith.remsi %0, %3 : vector<32x1xi32>
    %c0_i32_0 = arith.constant 0 : i32
    %5 = vector.broadcast %c0_i32_0 : i32 to vector<32x1xi32>
    %6 = arith.cmpi ne, %4, %5 : vector<32x1xi32>
    %c0_i32_1 = arith.constant 0 : i32
    %7 = vector.broadcast %c0_i32_1 : i32 to vector<32x1xi32>
    %8 = arith.cmpi slt, %4, %7 : vector<32x1xi32>
    %c0_i32_2 = arith.constant 0 : i32
    %9 = arith.cmpi slt, %2, %c0_i32_2 : i32
    %10 = vector.broadcast %9 : i1 to vector<32x1xi1>
    %11 = vector.broadcast %10 : vector<32x1xi1> to vector<32x1xi1>
    %12 = arith.xori %8, %11 : vector<32x1xi1>
    %13 = arith.andi %12, %6 : vector<32x1xi1>
    %14 = vector.broadcast %2 : i32 to vector<32x1xi32>
    %15 = arith.addi %4, %14 : vector<32x1xi32>
    %16 = arith.select %13, %15, %4 : vector<32x1xi1>, vector<32x1xi32>
    %c0_i32_3 = arith.constant 0 : i32
    %17 = vector.broadcast %c0_i32_3 : i32 to vector<32x1xi32>
    %18 = arith.cmpi ne, %16, %17 : vector<32x1xi32>
    %c15_i32 = arith.constant 15 : i32
    %19 = vector.broadcast %c15_i32 : i32 to vector<32x1xi32>
    %20 = arith.cmpi ne, %16, %19 : vector<32x1xi32>
    %c0 = arith.constant 0 : index
    %c0_4 = arith.constant 0 : index
    %21 = vector.load %arg1[%c0, %c0_4] : memref<32x128xf32, #tpu.memory_space<vmem>>, vector<32x128xf32>
    %c1_i32_5 = arith.constant 1 : i32
    %22 = tpu.dynamic_rotate %21 by %c1_i32_5 dim 0 : vector<32x128xf32>, i32 -> vector<32x128xf32>
    %cst = arith.constant 0.000000e+00 : f32
    %23 = vector.shape_cast %18 : vector<32x1xi1> to vector<32x1xi1>
    %24 = vector.broadcast %23 : vector<32x1xi1> to vector<32x128xi1>
    %25 = vector.broadcast %cst : f32 to vector<32x128xf32>
    %26 = arith.select %24, %22, %25 : vector<32x128xi1>, vector<32x128xf32>
    %c31_i32 = arith.constant 31 : i32
    %27 = tpu.dynamic_rotate %21 by %c31_i32 dim 0 : vector<32x128xf32>, i32 -> vector<32x128xf32>
    %cst_6 = arith.constant 0.000000e+00 : f32
    %28 = vector.shape_cast %20 : vector<32x1xi1> to vector<32x1xi1>
    %29 = vector.broadcast %28 : vector<32x1xi1> to vector<32x128xi1>
    %30 = vector.broadcast %cst_6 : f32 to vector<32x128xf32>
    %31 = arith.select %29, %27, %30 : vector<32x128xi1>, vector<32x128xf32>
    %c0_7 = arith.constant 0 : index
    %c0_8 = arith.constant 0 : index
    %c0_9 = arith.constant 0 : index
    %32 = vector.load %arg2[%c0_7, %c0_8, %c0_9] : memref<3x128x128xf32, #tpu.memory_space<vmem>>, vector<1x128x128xf32>
    %33 = vector.shape_cast %32 : vector<1x128x128xf32> to vector<128x128xf32>
    %cst_10 = arith.constant dense<0.000000e+00> : vector<32x128xf32>
    %34 = tpu.matmul %26, %33, %cst_10 {dimension_numbers = #tpu.dot_dimension_numbers<[1], [0], [0], [1], [0, 0, 1, 1], [], []>} : vector<32x128xf32>, vector<128x128xf32>, vector<32x128xf32> -> vector<32x128xf32>
    %c1 = arith.constant 1 : index
    %c0_11 = arith.constant 0 : index
    %c0_12 = arith.constant 0 : index
    %35 = vector.load %arg2[%c1, %c0_11, %c0_12] : memref<3x128x128xf32, #tpu.memory_space<vmem>>, vector<1x128x128xf32>
    %36 = vector.shape_cast %35 : vector<1x128x128xf32> to vector<128x128xf32>
    %cst_13 = arith.constant dense<0.000000e+00> : vector<32x128xf32>
    %37 = tpu.matmul %21, %36, %cst_13 {dimension_numbers = #tpu.dot_dimension_numbers<[1], [0], [0], [1], [0, 0, 1, 1], [], []>} : vector<32x128xf32>, vector<128x128xf32>, vector<32x128xf32> -> vector<32x128xf32>
    %38 = arith.addf %34, %37 : vector<32x128xf32>
    %c2 = arith.constant 2 : index
    %c0_14 = arith.constant 0 : index
    %c0_15 = arith.constant 0 : index
    %39 = vector.load %arg2[%c2, %c0_14, %c0_15] : memref<3x128x128xf32, #tpu.memory_space<vmem>>, vector<1x128x128xf32>
    %40 = vector.shape_cast %39 : vector<1x128x128xf32> to vector<128x128xf32>
    %cst_16 = arith.constant dense<0.000000e+00> : vector<32x128xf32>
    %41 = tpu.matmul %31, %40, %cst_16 {dimension_numbers = #tpu.dot_dimension_numbers<[1], [0], [0], [1], [0, 0, 1, 1], [], []>} : vector<32x128xf32>, vector<128x128xf32>, vector<32x128xf32> -> vector<32x128xf32>
    %42 = arith.addf %38, %41 : vector<32x128xf32>
    %c0_17 = arith.constant 0 : index
    %c0_18 = arith.constant 0 : index
    %43 = vector.load %arg3[%c0_17, %c0_18] : memref<1x128xf32, #tpu.memory_space<vmem>>, vector<1x128xf32>
    %44 = vector.broadcast %43 : vector<1x128xf32> to vector<32x128xf32>
    %45 = arith.mulf %42, %44 : vector<32x128xf32>
    %c0_19 = arith.constant 0 : index
    %c0_20 = arith.constant 0 : index
    %46 = vector.load %arg4[%c0_19, %c0_20] : memref<1x128xf32, #tpu.memory_space<vmem>>, vector<1x128xf32>
    %47 = vector.broadcast %46 : vector<1x128xf32> to vector<32x128xf32>
    %48 = arith.addf %45, %47 : vector<32x128xf32>
    %cst_21 = arith.constant 0.000000e+00 : f32
    %49 = vector.broadcast %cst_21 : f32 to vector<32x128xf32>
    %50 = arith.maximumf %48, %49 : vector<32x128xf32>
    %c1_i32_22 = arith.constant 1 : i32
    %51 = tpu.dynamic_rotate %50 by %c1_i32_22 dim 0 : vector<32x128xf32>, i32 -> vector<32x128xf32>
    %cst_23 = arith.constant 0.000000e+00 : f32
    %52 = vector.shape_cast %18 : vector<32x1xi1> to vector<32x1xi1>
    %53 = vector.broadcast %52 : vector<32x1xi1> to vector<32x128xi1>
    %54 = vector.broadcast %cst_23 : f32 to vector<32x128xf32>
    %55 = arith.select %53, %51, %54 : vector<32x128xi1>, vector<32x128xf32>
    %c31_i32_24 = arith.constant 31 : i32
    %56 = tpu.dynamic_rotate %50 by %c31_i32_24 dim 0 : vector<32x128xf32>, i32 -> vector<32x128xf32>
    %cst_25 = arith.constant 0.000000e+00 : f32
    %57 = vector.shape_cast %20 : vector<32x1xi1> to vector<32x1xi1>
    %58 = vector.broadcast %57 : vector<32x1xi1> to vector<32x128xi1>
    %59 = vector.broadcast %cst_25 : f32 to vector<32x128xf32>
    %60 = arith.select %58, %56, %59 : vector<32x128xi1>, vector<32x128xf32>
    %c0_26 = arith.constant 0 : index
    %c0_27 = arith.constant 0 : index
    %c0_28 = arith.constant 0 : index
    %61 = vector.load %arg5[%c0_26, %c0_27, %c0_28] : memref<3x128x128xf32, #tpu.memory_space<vmem>>, vector<1x128x128xf32>
    %62 = vector.shape_cast %61 : vector<1x128x128xf32> to vector<128x128xf32>
    %cst_29 = arith.constant dense<0.000000e+00> : vector<32x128xf32>
    %63 = tpu.matmul %55, %62, %cst_29 {dimension_numbers = #tpu.dot_dimension_numbers<[1], [0], [0], [1], [0, 0, 1, 1], [], []>} : vector<32x128xf32>, vector<128x128xf32>, vector<32x128xf32> -> vector<32x128xf32>
    %c1_30 = arith.constant 1 : index
    %c0_31 = arith.constant 0 : index
    %c0_32 = arith.constant 0 : index
    %64 = vector.load %arg5[%c1_30, %c0_31, %c0_32] : memref<3x128x128xf32, #tpu.memory_space<vmem>>, vector<1x128x128xf32>
    %65 = vector.shape_cast %64 : vector<1x128x128xf32> to vector<128x128xf32>
    %cst_33 = arith.constant dense<0.000000e+00> : vector<32x128xf32>
    %66 = tpu.matmul %50, %65, %cst_33 {dimension_numbers = #tpu.dot_dimension_numbers<[1], [0], [0], [1], [0, 0, 1, 1], [], []>} : vector<32x128xf32>, vector<128x128xf32>, vector<32x128xf32> -> vector<32x128xf32>
    %67 = arith.addf %63, %66 : vector<32x128xf32>
    %c2_34 = arith.constant 2 : index
    %c0_35 = arith.constant 0 : index
    %c0_36 = arith.constant 0 : index
    %68 = vector.load %arg5[%c2_34, %c0_35, %c0_36] : memref<3x128x128xf32, #tpu.memory_space<vmem>>, vector<1x128x128xf32>
    %69 = vector.shape_cast %68 : vector<1x128x128xf32> to vector<128x128xf32>
    %cst_37 = arith.constant dense<0.000000e+00> : vector<32x128xf32>
    %70 = tpu.matmul %60, %69, %cst_37 {dimension_numbers = #tpu.dot_dimension_numbers<[1], [0], [0], [1], [0, 0, 1, 1], [], []>} : vector<32x128xf32>, vector<128x128xf32>, vector<32x128xf32> -> vector<32x128xf32>
    %71 = arith.addf %67, %70 : vector<32x128xf32>
    %c0_38 = arith.constant 0 : index
    %c0_39 = arith.constant 0 : index
    %72 = vector.load %arg6[%c0_38, %c0_39] : memref<1x128xf32, #tpu.memory_space<vmem>>, vector<1x128xf32>
    %73 = vector.broadcast %72 : vector<1x128xf32> to vector<32x128xf32>
    %74 = arith.mulf %71, %73 : vector<32x128xf32>
    %c0_40 = arith.constant 0 : index
    %c0_41 = arith.constant 0 : index
    %75 = vector.load %arg7[%c0_40, %c0_41] : memref<1x128xf32, #tpu.memory_space<vmem>>, vector<1x128xf32>
    %76 = vector.broadcast %75 : vector<1x128xf32> to vector<32x128xf32>
    %77 = arith.addf %74, %76 : vector<32x128xf32>
    %cst_42 = arith.constant 0.000000e+00 : f32
    %78 = vector.broadcast %cst_42 : f32 to vector<32x128xf32>
    %79 = arith.maximumf %77, %78 : vector<32x128xf32>
    %c1_i32_43 = arith.constant 1 : i32
    %80 = tpu.dynamic_rotate %79 by %c1_i32_43 dim 0 : vector<32x128xf32>, i32 -> vector<32x128xf32>
    %cst_44 = arith.constant 0.000000e+00 : f32
    %81 = vector.shape_cast %18 : vector<32x1xi1> to vector<32x1xi1>
    %82 = vector.broadcast %81 : vector<32x1xi1> to vector<32x128xi1>
    %83 = vector.broadcast %cst_44 : f32 to vector<32x128xf32>
    %84 = arith.select %82, %80, %83 : vector<32x128xi1>, vector<32x128xf32>
    %c31_i32_45 = arith.constant 31 : i32
    %85 = tpu.dynamic_rotate %79 by %c31_i32_45 dim 0 : vector<32x128xf32>, i32 -> vector<32x128xf32>
    %cst_46 = arith.constant 0.000000e+00 : f32
    %86 = vector.shape_cast %20 : vector<32x1xi1> to vector<32x1xi1>
    %87 = vector.broadcast %86 : vector<32x1xi1> to vector<32x128xi1>
    %88 = vector.broadcast %cst_46 : f32 to vector<32x128xf32>
    %89 = arith.select %87, %85, %88 : vector<32x128xi1>, vector<32x128xf32>
    %c0_47 = arith.constant 0 : index
    %c0_48 = arith.constant 0 : index
    %c0_49 = arith.constant 0 : index
    %90 = vector.load %arg8[%c0_47, %c0_48, %c0_49] : memref<3x128x128xf32, #tpu.memory_space<vmem>>, vector<1x128x128xf32>
    %91 = vector.shape_cast %90 : vector<1x128x128xf32> to vector<128x128xf32>
    %cst_50 = arith.constant dense<0.000000e+00> : vector<32x128xf32>
    %92 = tpu.matmul %84, %91, %cst_50 {dimension_numbers = #tpu.dot_dimension_numbers<[1], [0], [0], [1], [0, 0, 1, 1], [], []>} : vector<32x128xf32>, vector<128x128xf32>, vector<32x128xf32> -> vector<32x128xf32>
    %c1_51 = arith.constant 1 : index
    %c0_52 = arith.constant 0 : index
    %c0_53 = arith.constant 0 : index
    %93 = vector.load %arg8[%c1_51, %c0_52, %c0_53] : memref<3x128x128xf32, #tpu.memory_space<vmem>>, vector<1x128x128xf32>
    %94 = vector.shape_cast %93 : vector<1x128x128xf32> to vector<128x128xf32>
    %cst_54 = arith.constant dense<0.000000e+00> : vector<32x128xf32>
    %95 = tpu.matmul %79, %94, %cst_54 {dimension_numbers = #tpu.dot_dimension_numbers<[1], [0], [0], [1], [0, 0, 1, 1], [], []>} : vector<32x128xf32>, vector<128x128xf32>, vector<32x128xf32> -> vector<32x128xf32>
    %96 = arith.addf %92, %95 : vector<32x128xf32>
    %c2_55 = arith.constant 2 : index
    %c0_56 = arith.constant 0 : index
    %c0_57 = arith.constant 0 : index
    %97 = vector.load %arg8[%c2_55, %c0_56, %c0_57] : memref<3x128x128xf32, #tpu.memory_space<vmem>>, vector<1x128x128xf32>
    %98 = vector.shape_cast %97 : vector<1x128x128xf32> to vector<128x128xf32>
    %cst_58 = arith.constant dense<0.000000e+00> : vector<32x128xf32>
    %99 = tpu.matmul %89, %98, %cst_58 {dimension_numbers = #tpu.dot_dimension_numbers<[1], [0], [0], [1], [0, 0, 1, 1], [], []>} : vector<32x128xf32>, vector<128x128xf32>, vector<32x128xf32> -> vector<32x128xf32>
    %100 = arith.addf %96, %99 : vector<32x128xf32>
    %c0_59 = arith.constant 0 : index
    %c0_60 = arith.constant 0 : index
    %101 = vector.load %arg9[%c0_59, %c0_60] : memref<1x128xf32, #tpu.memory_space<vmem>>, vector<1x128xf32>
    %102 = vector.broadcast %101 : vector<1x128xf32> to vector<32x128xf32>
    %103 = arith.mulf %100, %102 : vector<32x128xf32>
    %c0_61 = arith.constant 0 : index
    %c0_62 = arith.constant 0 : index
    %104 = vector.load %arg10[%c0_61, %c0_62] : memref<1x128xf32, #tpu.memory_space<vmem>>, vector<1x128xf32>
    %105 = vector.broadcast %104 : vector<1x128xf32> to vector<32x128xf32>
    %106 = arith.addf %103, %105 : vector<32x128xf32>
    %cst_63 = arith.constant 0.000000e+00 : f32
    %107 = vector.broadcast %cst_63 : f32 to vector<32x128xf32>
    %108 = arith.maximumf %106, %107 : vector<32x128xf32>
    %c0_64 = arith.constant 0 : index
    %c0_65 = arith.constant 0 : index
    %109 = vector.load %arg11[%c0_64, %c0_65] : memref<128x32xf32, #tpu.memory_space<vmem>>, vector<128x32xf32>
    %cst_66 = arith.constant dense<0.000000e+00> : vector<32x32xf32>
    %110 = tpu.matmul %108, %109, %cst_66 {dimension_numbers = #tpu.dot_dimension_numbers<[1], [0], [0], [1], [0, 0, 1, 1], [], []>} : vector<32x128xf32>, vector<128x32xf32>, vector<32x32xf32> -> vector<32x32xf32>
    %c0_67 = arith.constant 0 : index
    %c0_68 = arith.constant 0 : index
    %111 = vector.load %arg12[%c0_67, %c0_68] : memref<1x32xf32, #tpu.memory_space<vmem>>, vector<1x32xf32>
    %112 = vector.broadcast %111 : vector<1x32xf32> to vector<32x32xf32>
    %113 = arith.addf %110, %112 : vector<32x32xf32>
    %114 = arith.negf %113 : vector<32x32xf32>
    %115 = math.exp %114 : vector<32x32xf32>
    %cst_69 = arith.constant 1.000000e+00 : f32
    %116 = vector.broadcast %cst_69 : f32 to vector<32x32xf32>
    %117 = arith.addf %116, %115 : vector<32x32xf32>
    %118 = arith.divf %116, %117 : vector<32x32xf32>
    %c0_70 = arith.constant 0 : index
    %c0_71 = arith.constant 0 : index
    %119 = vector.load %arg13[%c0_70, %c0_71] : memref<32x32xf32, #tpu.memory_space<vmem>>, vector<32x32xf32>
    tpu.vector_store %arg13[%c0_70, %c0_71], %118 {strides = array<i32>} : memref<32x32xf32, #tpu.memory_space<vmem>>, vector<32x32xf32>,
    return
  }
  func.func @transform_0(%arg0: i32) -> (i32, i32) {
    %c0_i32 = arith.constant 0 : i32
    %c0_i32_0 = arith.constant 0 : i32
    return %arg0, %c0_i32 : i32, i32
  }
  func.func @transform_1(%arg0: i32) -> (i32, i32, i32) {
    %c0_i32 = arith.constant 0 : i32
    %c0_i32_0 = arith.constant 0 : i32
    %c0_i32_1 = arith.constant 0 : i32
    %c0_i32_2 = arith.constant 0 : i32
    return %c0_i32, %c0_i32_0, %c0_i32_1 : i32, i32, i32
  }
  func.func @transform_2(%arg0: i32) -> (i32, i32) {
    %c0_i32 = arith.constant 0 : i32
    %c0_i32_0 = arith.constant 0 : i32
    %c0_i32_1 = arith.constant 0 : i32
    return %c0_i32, %c0_i32_0 : i32, i32
  }
  func.func @transform_3(%arg0: i32) -> (i32, i32) {
    %c0_i32 = arith.constant 0 : i32
    %c0_i32_0 = arith.constant 0 : i32
    %c0_i32_1 = arith.constant 0 : i32
    return %c0_i32, %c0_i32_0 : i32, i32
  }
  func.func @transform_4(%arg0: i32) -> (i32, i32, i32) {
    %c0_i32 = arith.constant 0 : i32
    %c0_i32_0 = arith.constant 0 : i32
    %c0_i32_1 = arith.constant 0 : i32
    %c0_i32_2 = arith.constant 0 : i32
    return %c0_i32, %c0_i32_0, %c0_i32_1 : i32, i32, i32
  }
  func.func @transform_5(%arg0: i32) -> (i32, i32) {
    %c0_i32 = arith.constant 0 : i32
    %c0_i32_0 = arith.constant 0 : i32
    %c0_i32_1 = arith.constant 0 : i32
    return %c0_i32, %c0_i32_0 : i32, i32
  }
  func.func @transform_6(%arg0: i32) -> (i32, i32) {
    %c0_i32 = arith.constant 0 : i32
    %c0_i32_0 = arith.constant 0 : i32
    %c0_i32_1 = arith.constant 0 : i32
    return %c0_i32, %c0_i32_0 : i32, i32
  }
  func.func @transform_7(%arg0: i32) -> (i32, i32, i32) {
    %c0_i32 = arith.constant 0 : i32
    %c0_i32_0 = arith.constant 0 : i32
    %c0_i32_1 = arith.constant 0 : i32
    %c0_i32_2 = arith.constant 0 : i32
    return %c0_i32, %c0_i32_0, %c0_i32_1 : i32, i32, i32
  }
  func.func @transform_8(%arg0: i32) -> (i32, i32) {
    %c0_i32 = arith.constant 0 : i32
    %c0_i32_0 = arith.constant 0 : i32
    %c0_i32_1 = arith.constant 0 : i32
    return %c0_i32, %c0_i32_0 : i32, i32
  }
  func.func @transform_9(%arg0: i32) -> (i32, i32) {
    %c0_i32 = arith.constant 0 : i32
    %c0_i32_0 = arith.constant 0 : i32
    %c0_i32_1 = arith.constant 0 : i32
    return %c0_i32, %c0_i32_0 : i32, i32
  }
  func.func @transform_10(%arg0: i32) -> (i32, i32) {
    %c0_i32 = arith.constant 0 : i32
    %c0_i32_0 = arith.constant 0 : i32
    %c0_i32_1 = arith.constant 0 : i32
    return %c0_i32, %c0_i32_0 : i32, i32
  }
  func.func @transform_11(%arg0: i32) -> (i32, i32) {
    %c0_i32 = arith.constant 0 : i32
    %c0_i32_0 = arith.constant 0 : i32
    %c0_i32_1 = arith.constant 0 : i32
    return %c0_i32, %c0_i32_0 : i32, i32
  }
  func.func @transform_12(%arg0: i32) -> (i32, i32) {
    %c0_i32 = arith.constant 0 : i32
    %c0_i32_0 = arith.constant 0 : i32
    return %arg0, %c0_i32 : i32, i32
  }
}

</mosaic_0001>

<llo_original>
// kernel: tpu_custom_call.1
$region0: #{tpu_custom_call.1}
  #allocation0 [shape = 'u32[]', space=smem, size = 0x4, offset = 0x4, fixed_abs, tag = 'smem constant byte address 0x4 - core index']
  #allocation1 [shape = 'u32[144,128]{1,0:T(1,128)}', space=vmem, size = 0x12000, scoped, tag = 'internal scratch']
  %s0 = inlined_call_operand.vmem [shape: f32[32,128], index: 0, kind: input, shape index: {}]
  %s1 = inlined_call_operand.hbm [shape: f32[3,128,128], index: 1, kind: input, shape index: {}]
  %s2 = inlined_call_operand.vmem [shape: f32[1,128], index: 2, kind: input, shape index: {}]
  %s3 = inlined_call_operand.vmem [shape: f32[1,128], index: 3, kind: input, shape index: {}]
  %s4 = inlined_call_operand.hbm [shape: f32[3,128,128], index: 4, kind: input, shape index: {}]
  %s5 = inlined_call_operand.vmem [shape: f32[1,128], index: 5, kind: input, shape index: {}]
  %s6 = inlined_call_operand.vmem [shape: f32[1,128], index: 6, kind: input, shape index: {}]
  %s7 = inlined_call_operand.hbm [shape: f32[3,128,128], index: 7, kind: input, shape index: {}]
  %s8 = inlined_call_operand.vmem [shape: f32[1,128], index: 8, kind: input, shape index: {}]
  %s9 = inlined_call_operand.vmem [shape: f32[1,128], index: 9, kind: input, shape index: {}]
  %s10 = inlined_call_operand.vmem [shape: f32[128,32], index: 10, kind: input, shape index: {}]
  %s11 = inlined_call_operand.vmem [shape: f32[1,32], index: 11, kind: input, shape index: {}]
  %s12 = inlined_call_operand.hbm [shape: f32[32,32], index: 12, kind: output, shape index: {}]
  %s13 = sld [smem:[#allocation0]]
  $region70: #{tpu_custom_call.1} parent=0
    _
  %s15 = ssub.s32 1, %s13
  %s16 = scalar_select 0, %s15, %s13
  $region1: #{tpu_custom_call.1} parent=0
    #allocation2 [shape = 'u8[196608]{0}', space=vmem, size = 0x30000, scoped, tag = 'input window, operand 1, single buffered']
    #allocation3 [shape = 's32[1]{0}', space=sflag, size = 0x4, scoped, tag = 'scoped memory for tpu_custom_call.1']
    #allocation4 [shape = 's32[1]{0}', space=sflag, size = 0x4, scoped, tag = 'scoped memory for tpu_custom_call.1']
    #allocation5 [shape = 'u8[196608]{0}', space=vmem, size = 0x30000, scoped, tag = 'input window, operand 4, single buffered']
    #allocation6 [shape = 's32[1]{0}', space=sflag, size = 0x4, scoped, tag = 'scoped memory for tpu_custom_call.1']
    #allocation7 [shape = 'u8[196608]{0}', space=vmem, size = 0x30000, scoped, tag = 'input window, operand 7, single buffered']
    #allocation8 [shape = 'u8[16384]{0}', space=vmem, size = 0x4000, scoped, tag = 'output window, operand 0, single buffered']
    %17 = vsyncpa [#allocation3], 0
    %18 = vsyncpa [#allocation6], 0
    %19 = vsyncpa [#allocation4], 0
    // Predicated region
    $region2: #{tpu_custom_call.1} parent=1 // pred_check
      _
    $region3: #{tpu_custom_call.1} parent=1 // pred_check_branch
      %21 = sbr.rel (0) target = $region5
    $region4: #{tpu_custom_call.1} parent=1 // pred_region
      _
    $region5: #{tpu_custom_call.1} parent=1 // pred_fallthru
      _
    // Predicated region
    $region6: #{tpu_custom_call.1} parent=1 // pred_check
      _
    $region7: #{tpu_custom_call.1} parent=1 // pred_check_branch
      %23 = sbr.rel (0) target = $region9
    $region8: #{tpu_custom_call.1} parent=1 // pred_region
      %s25 = ssub.s32 6144, 6144
      %26 = vsyncadd [#allocation3], %s25
      %s27 = sshll.u32 [#allocation2], 4
      %s28 = int_to_ptr.vmem [resolvable:$true] %s27
      %33 = dma.hbm_to_vmem [thread:$0]  %s1, 6144, %s28, [#allocation3], 128, 128, 8
    $region9: #{tpu_custom_call.1} parent=1 // pred_fallthru
      _
    // Predicated region
    $region10: #{tpu_custom_call.1} parent=1 // pred_check
      _
    $region11: #{tpu_custom_call.1} parent=1 // pred_check_branch
      %35 = sbr.rel (0) target = $region13
    $region12: #{tpu_custom_call.1} parent=1 // pred_region
      _
    $region13: #{tpu_custom_call.1} parent=1 // pred_fallthru
      _
    // Predicated region
    $region14: #{tpu_custom_call.1} parent=1 // pred_check
      _
    $region15: #{tpu_custom_call.1} parent=1 // pred_check_branch
      %37 = sbr.rel (0) target = $region17
    $region16: #{tpu_custom_call.1} parent=1 // pred_region
      _
    $region17: #{tpu_custom_call.1} parent=1 // pred_fallthru
      _
    // Predicated region
    $region18: #{tpu_custom_call.1} parent=1 // pred_check
      _
    $region19: #{tpu_custom_call.1} parent=1 // pred_check_branch
      %39 = sbr.rel (0) target = $region21
    $region20: #{tpu_custom_call.1} parent=1 // pred_region
      %s41 = ssub.s32 6144, 6144
      %42 = vsyncadd [#allocation6], %s41
      %s43 = sshll.u32 [#allocation5], 4
      %s44 = int_to_ptr.vmem [resolvable:$true] %s43
      %49 = dma.hbm_to_vmem [thread:$0]  %s4, 6144, %s44, [#allocation6], 128, 128, 8
    $region21: #{tpu_custom_call.1} parent=1 // pred_fallthru
      _
    // Predicated region
    $region22: #{tpu_custom_call.1} parent=1 // pred_check
      _
    $region23: #{tpu_custom_call.1} parent=1 // pred_check_branch
      %51 = sbr.rel (0) target = $region25
    $region24: #{tpu_custom_call.1} parent=1 // pred_region
      _
    $region25: #{tpu_custom_call.1} parent=1 // pred_fallthru
      _
    // Predicated region
    $region26: #{tpu_custom_call.1} parent=1 // pred_check
      _
    $region27: #{tpu_custom_call.1} parent=1 // pred_check_branch
      %53 = sbr.rel (0) target = $region29
    $region28: #{tpu_custom_call.1} parent=1 // pred_region
      _
    $region29: #{tpu_custom_call.1} parent=1 // pred_fallthru
      _
    // Predicated region
    $region30: #{tpu_custom_call.1} parent=1 // pred_check
      _
    $region31: #{tpu_custom_call.1} parent=1 // pred_check_branch
      %55 = sbr.rel (0) target = $region33
    $region32: #{tpu_custom_call.1} parent=1 // pred_region
      %s57 = ssub.s32 6144, 6144
      %58 = vsyncadd [#allocation6], %s57
      %s59 = sshll.u32 [#allocation7], 4
      %s60 = int_to_ptr.vmem [resolvable:$true] %s59
      %65 = dma.hbm_to_vmem [thread:$0]  %s7, 6144, %s60, [#allocation6], 128, 128, 8
    $region33: #{tpu_custom_call.1} parent=1 // pred_fallthru
      _
    // Predicated region
    $region34: #{tpu_custom_call.1} parent=1 // pred_check
      _
    $region35: #{tpu_custom_call.1} parent=1 // pred_check_branch
      %67 = sbr.rel (0) target = $region37
    $region36: #{tpu_custom_call.1} parent=1 // pred_region
      _
    $region37: #{tpu_custom_call.1} parent=1 // pred_fallthru
      _
    // Predicated region
    $region38: #{tpu_custom_call.1} parent=1 // pred_check
      _
    $region39: #{tpu_custom_call.1} parent=1 // pred_check_branch
      %69 = sbr.rel (0) target = $region41
    $region40: #{tpu_custom_call.1} parent=1 // pred_region
      _
    $region41: #{tpu_custom_call.1} parent=1 // pred_fallthru
      _
    // Predicated region
    $region42: #{tpu_custom_call.1} parent=1 // pred_check
      _
    $region43: #{tpu_custom_call.1} parent=1 // pred_check_branch
      %71 = sbr.rel (0) target = $region45
    $region44: #{tpu_custom_call.1} parent=1 // pred_region
      _
    $region45: #{tpu_custom_call.1} parent=1 // pred_fallthru
      _
    // Predicated region
    $region46: #{tpu_custom_call.1} parent=1 // pred_check
      _
    $region47: #{tpu_custom_call.1} parent=1 // pred_check_branch
      %73 = sbr.rel (0) target = $region49
    $region48: #{tpu_custom_call.1} parent=1 // pred_region
      _
    $region49: #{tpu_custom_call.1} parent=1 // pred_fallthru
      _
    // Predicated region
    $region50: #{tpu_custom_call.1} parent=1 // pred_check
      _
    $region51: #{tpu_custom_call.1} parent=1 // pred_check_branch
      %75 = sbr.rel (0) target = $region53
    $region52: #{tpu_custom_call.1} parent=1 // pred_region
      %76 = dma.done [#allocation3], 6144
    $region53: #{tpu_custom_call.1} parent=1 // pred_fallthru
      _
    // Predicated region
    $region54: #{tpu_custom_call.1} parent=1 // pred_check
      _
    $region55: #{tpu_custom_call.1} parent=1 // pred_check_branch
      %78 = sbr.rel (0) target = $region57
    $region56: #{tpu_custom_call.1} parent=1 // pred_region
      %79 = dma.done [#allocation6], 6144
    $region57: #{tpu_custom_call.1} parent=1 // pred_fallthru
      _
    // Predicated region
    $region58: #{tpu_custom_call.1} parent=1 // pred_check
      _
    $region59: #{tpu_custom_call.1} parent=1 // pred_check_branch
      %81 = sbr.rel (0) target = $region61
    $region60: #{tpu_custom_call.1} parent=1 // pred_region
      %82 = dma.done [#allocation6], 6144
    $region61: #{tpu_custom_call.1} parent=1 // pred_fallthru
      _
    %v83 = vlaneseq
    %v84 = vshrl.u32 %v83, 7
    %v85 = vadd.s32 %v84, 8
    %v86 = vadd.s32 %v84, 16
    %v87 = vadd.s32 %v84, 24
    %vm88 = vcmp.lt.s32.totalorder %v84, 0
    %v89 = vsub.s32 0, %v84
    %v90 = vsel %vm88, %v89, %v84
    %v91 = vshrl.u32 %v90, 4
    %v92 = vand.u32 %v90, 15
    %v93 = vsub.s32 0, %v92
    %v94 = vsel %vm88, %v93, %v92
    %vm95 = vcmp.lt.s32.totalorder %v85, 0
    %v96 = vsub.s32 0, %v85
    %v97 = vsel %vm95, %v96, %v85
    %v98 = vshrl.u32 %v97, 4
    %v99 = vand.u32 %v97, 15
    %v100 = vsub.s32 0, %v99
    %v101 = vsel %vm95, %v100, %v99
    %vm102 = vcmp.lt.s32.totalorder %v86, 0
    %v103 = vsub.s32 0, %v86
    %v104 = vsel %vm102, %v103, %v86
    %v105 = vshrl.u32 %v104, 4
    %v106 = vand.u32 %v104, 15
    %v107 = vsub.s32 0, %v106
    %v108 = vsel %vm102, %v107, %v106
    %vm109 = vcmp.lt.s32.totalorder %v87, 0
    %v110 = vsub.s32 0, %v87
    %v111 = vsel %vm109, %v110, %v87
    %v112 = vshrl.u32 %v111, 4
    %v113 = vand.u32 %v111, 15
    %v114 = vsub.s32 0, %v113
    %v115 = vsel %vm109, %v114, %v113
    %vm116 = vcmp.ne.s32.totalorder %v94, 0
    %vm117 = vcmp.ne.s32.totalorder %v101, 0
    %vm118 = vcmp.ne.s32.totalorder %v108, 0
    %vm119 = vcmp.ne.s32.totalorder %v115, 0
    %vm120 = vcmp.lt.s32.totalorder %v94, 0
    %vm121 = vcmp.lt.s32.totalorder %v101, 0
    %vm122 = vcmp.lt.s32.totalorder %v108, 0
    %vm123 = vcmp.lt.s32.totalorder %v115, 0
    %vm124 = vmand %vm120, %vm116
    %vm125 = vmand %vm121, %vm117
    %vm126 = vmand %vm122, %vm118
    %vm127 = vmand %vm123, %vm119
    %v128 = vadd.s32 %v94, 16
    %v129 = vadd.s32 %v101, 16
    %v130 = vadd.s32 %v108, 16
    %v131 = vadd.s32 %v115, 16
    %v132 = vsel %vm124, %v128, %v94
    %v133 = vsel %vm125, %v129, %v101
    %v134 = vsel %vm126, %v130, %v108
    %v135 = vsel %vm127, %v131, %v115
    %vm136 = vcmp.ne.s32.totalorder %v132, 0
    %vm137 = vcmp.ne.s32.totalorder %v133, 0
    %vm138 = vcmp.ne.s32.totalorder %v134, 0
    %vm139 = vcmp.ne.s32.totalorder %v135, 0
    %vm140 = vcmp.ne.s32.totalorder %v132, 15
    %vm141 = vcmp.ne.s32.totalorder %v133, 15
    %vm142 = vcmp.ne.s32.totalorder %v134, 15
    %vm143 = vcmp.ne.s32.totalorder %v135, 15
    %v144 = vld [vmem:[%s0] sm:$0xff]
    %v145 = vld [vmem:[%s0 + $0x8] sm:$0xff]
    %v146 = vld [vmem:[%s0 + $0x10] sm:$0xff]
    %v147 = vld [vmem:[%s0 + $0x18] sm:$0xff]
    %v148 = vrot.slane %v144, 7
    %v149 = vrot.slane %v145, 7
    %v150 = vrot.slane %v146, 7
    %v151 = vrot.slane %v147, 7
    %vm152 = vcmp.lt.s32.totalorder %v84, 1
    %v153 = vsel %vm152, %v150, %v151
    %v154 = vsel %vm152, %v149, %v150
    %v155 = vsel %vm152, %v148, %v149
    %v156 = vsel %vm152, %v151, %v148
    %v157 = vsel %vm136, 1, 0
    %v158 = vsel %vm137, 1, 0
    %v159 = vsel %vm138, 1, 0
    %v160 = vsel %vm139, 1, 0
    %vm161 = vcmp.eq.s32.totalorder %v157, 1
    %vm162 = vcmp.eq.s32.totalorder %v158, 1
    %vm163 = vcmp.eq.s32.totalorder %v159, 1
    %vm164 = vcmp.eq.s32.totalorder %v160, 1
    %v165 = vsel %vm161, %v156, 0.0
    %v166 = vsel %vm162, %v155, 0.0
    %v167 = vsel %vm163, %v154, 0.0
    %v168 = vsel %vm164, %v153, 0.0
    %v169 = vrot.slane %v144, 1
    %v170 = vrot.slane %v145, 1
    %v171 = vrot.slane %v146, 1
    %v172 = vrot.slane %v147, 1
    %vm173 = vcmp.lt.s32.totalorder %v84, 7
    %v174 = vsel %vm173, %v171, %v172
    %v175 = vsel %vm173, %v170, %v171
    %v176 = vsel %vm173, %v169, %v170
    %v177 = vsel %vm173, %v172, %v169
    %v178 = vsel %vm140, 1, 0
    %v179 = vsel %vm141, 1, 0
    %v180 = vsel %vm142, 1, 0
    %v181 = vsel %vm143, 1, 0
    %vm182 = vcmp.eq.s32.totalorder %v178, 1
    %vm183 = vcmp.eq.s32.totalorder %v179, 1
    %vm184 = vcmp.eq.s32.totalorder %v180, 1
    %vm185 = vcmp.eq.s32.totalorder %v181, 1
    %v186 = vsel %vm182, %v176, 0.0
    %v187 = vsel %vm183, %v175, 0.0
    %v188 = vsel %vm184, %v174, 0.0
    %v189 = vsel %vm185, %v177, 0.0
    %v190 = vld [vmem:[#allocation2] sm:$0xff]
    %v191 = vld [vmem:[#allocation2 + $0x8] sm:$0xff]
    %v192 = vld [vmem:[#allocation2 + $0x10] sm:$0xff]
    %v193 = vld [vmem:[#allocation2 + $0x18] sm:$0xff]
    %v194 = vld [vmem:[#allocation2 + $0x20] sm:$0xff]
    %v195 = vld [vmem:[#allocation2 + $0x28] sm:$0xff]
    %v196 = vld [vmem:[#allocation2 + $0x30] sm:$0xff]
    %v197 = vld [vmem:[#allocation2 + $0x38] sm:$0xff]
    %v198 = vld [vmem:[#allocation2 + $0x40] sm:$0xff]
    %v199 = vld [vmem:[#allocation2 + $0x48] sm:$0xff]
    %v200 = vld [vmem:[#allocation2 + $0x50] sm:$0xff]
    %v201 = vld [vmem:[#allocation2 + $0x58] sm:$0xff]
    %v202 = vld [vmem:[#allocation2 + $0x60] sm:$0xff]
    %v203 = vld [vmem:[#allocation2 + $0x68] sm:$0xff]
    %v204 = vld [vmem:[#allocation2 + $0x70] sm:$0xff]
    %v205 = vld [vmem:[#allocation2 + $0x78] sm:$0xff]
    %s206 = scalar_lea.vmem [#allocation2], 128
    %v207 = vld [vmem:[%s206] sm:$0xff]
    %v208 = vld [vmem:[%s206 + $0x8] sm:$0xff]
    %v209 = vld [vmem:[%s206 + $0x10] sm:$0xff]
    %v210 = vld [vmem:[%s206 + $0x18] sm:$0xff]
    %v211 = vld [vmem:[%s206 + $0x20] sm:$0xff]
    %v212 = vld [vmem:[%s206 + $0x28] sm:$0xff]
    %v213 = vld [vmem:[%s206 + $0x30] sm:$0xff]
    %v214 = vld [vmem:[%s206 + $0x38] sm:$0xff]
    %v215 = vld [vmem:[%s206 + $0x40] sm:$0xff]
    %v216 = vld [vmem:[%s206 + $0x48] sm:$0xff]
    %v217 = vld [vmem:[%s206 + $0x50] sm:$0xff]
    %v218 = vld [vmem:[%s206 + $0x58] sm:$0xff]
    %v219 = vld [vmem:[%s206 + $0x60] sm:$0xff]
    %v220 = vld [vmem:[%s206 + $0x68] sm:$0xff]
    %v221 = vld [vmem:[%s206 + $0x70] sm:$0xff]
    %v222 = vld [vmem:[%s206 + $0x78] sm:$0xff]
    %223 = vmatprep.subr.mxu0 0.0
    %224 = vmatpush1.msra.mxu0 %v207
    %225 = vmatprep.subr.mxu0 0.0
    %226 = vmatpush1.msra.mxu0 %v208
    %227 = vmatprep.subr.mxu0 0.0
    %228 = vmatpush1.msra.mxu0 %v209
    %229 = vmatprep.subr.mxu0 0.0
    %230 = vmatpush1.msra.mxu0 %v210
    %231 = vmatprep.subr.mxu0 0.0
    %232 = vmatpush1.msra.mxu0 %v211
    %233 = vmatprep.subr.mxu0 0.0
    %234 = vmatpush1.msra.mxu0 %v212
    %235 = vmatprep.subr.mxu0 0.0
    %236 = vmatpush1.msra.mxu0 %v213
    %237 = vmatprep.subr.mxu0 0.0
    %238 = vmatpush1.msra.mxu0 %v214
    %239 = vmatprep.subr.mxu0 0.0
    %240 = vmatpush1.msra.mxu0 %v215
    %241 = vmatprep.subr.mxu0 0.0
    %242 = vmatpush1.msra.mxu0 %v216
    %243 = vmatprep.subr.mxu0 0.0
    %244 = vmatpush1.msra.mxu0 %v217
    %245 = vmatprep.subr.mxu0 0.0
    %246 = vmatpush1.msra.mxu0 %v218
    %247 = vmatprep.subr.mxu0 0.0
    %248 = vmatpush1.msra.mxu0 %v219
    %249 = vmatprep.subr.mxu0 0.0
    %250 = vmatpush1.msra.mxu0 %v220
    %251 = vmatprep.subr.mxu0 0.0
    %252 = vmatpush1.msra.mxu0 %v221
    %253 = vmatprep.subr.mxu0 0.0
    %254 = vmatpush1.msra.mxu0 %v222
    %255 = vmatprep.subr.mxu0 0.0
    %256 = vmatpush1.msra.mxu0 0.0
    %257 = vmatprep.subr.mxu0 0.0
    %258 = vmatpush1.msra.mxu0 0.0
    %259 = vmatprep.subr.mxu0 0.0
    %260 = vmatpush1.msra.mxu0 0.0
    %261 = vmatprep.subr.mxu0 0.0
    %262 = vmatpush1.msra.mxu0 0.0
    %263 = vmatprep.subr.mxu0 0.0
    %264 = vmatpush1.msra.mxu0 0.0
    %265 = vmatprep.subr.mxu0 0.0
    %266 = vmatpush1.msra.mxu0 0.0
    %267 = vmatprep.subr.mxu0 0.0
    %268 = vmatpush1.msra.mxu0 0.0
    %269 = vmatprep.subr.mxu0 0.0
    %270 = vmatpush1.msra.mxu0 0.0
    %271 = vmatprep.subr.mxu0 0.0
    %272 = vmatpush1.msra.mxu0 0.0
    %273 = vmatprep.subr.mxu0 0.0
    %274 = vmatpush1.msra.mxu0 0.0
    %275 = vmatprep.subr.mxu0 0.0
    %276 = vmatpush1.msra.mxu0 0.0
    %277 = vmatprep.subr.mxu0 0.0
    %278 = vmatpush1.msra.mxu0 0.0
    %279 = vmatprep.subr.mxu0 0.0
    %280 = vmatpush1.msra.mxu0 0.0
    %281 = vmatprep.subr.mxu0 0.0
    %282 = vmatpush1.msra.mxu0 0.0
    %283 = vmatprep.subr.mxu0 0.0
    %284 = vmatpush1.msra.mxu0 0.0
    %285 = vmatprep.subr.mxu0 0.0
    %286 = vmatpush1.msra.mxu0 0.0
    %287 = vmatprep.mubr.f32.mxu0 0.0
    %288 = vmatmul.mubr.f32.gmra.mrb[0].mxu0 %v144
    %v289 = vpop.f32.mrb[0].mxu0
    %v290 = vadd.f32 0.0, %v289
    %v291 = vpop.f32.mrb[0].mxu0
    %292 = vmatprep.mubr.f32.mxu0 0.0
    %293 = vmatmul.mubr.f32.gmra.mrb[0].mxu0 %v145
    %v294 = vpop.f32.mrb[0].mxu0
    %v295 = vadd.f32 0.0, %v294
    %v296 = vpop.f32.mrb[0].mxu0
    %297 = vmatprep.mubr.f32.mxu0 0.0
    %298 = vmatmul.mubr.f32.gmra.mrb[0].mxu0 %v146
    %v299 = vpop.f32.mrb[0].mxu0
    %v300 = vadd.f32 0.0, %v299
    %v301 = vpop.f32.mrb[0].mxu0
    %302 = vmatprep.mubr.f32.mxu0 0.0
    %303 = vmatmul.mubr.f32.gmra.mrb[0].mxu0 %v147
    %v304 = vpop.f32.mrb[0].mxu0
    %v305 = vadd.f32 0.0, %v304
    %v306 = vpop.f32.mrb[0].mxu0
    %307 = vdwg.mxu0
    %308 = vmatprep.subr.mxu0 0.0
    %309 = vmatpush1.msra.mxu0 %v190
    %310 = vmatprep.subr.mxu0 0.0
    %311 = vmatpush1.msra.mxu0 %v191
    %312 = vmatprep.subr.mxu0 0.0
    %313 = vmatpush1.msra.mxu0 %v192
    %314 = vmatprep.subr.mxu0 0.0
    %315 = vmatpush1.msra.mxu0 %v193
    %316 = vmatprep.subr.mxu0 0.0
    %317 = vmatpush1.msra.mxu0 %v194
    %318 = vmatprep.subr.mxu0 0.0
    %319 = vmatpush1.msra.mxu0 %v195
    %320 = vmatprep.subr.mxu0 0.0
    %321 = vmatpush1.msra.mxu0 %v196
    %322 = vmatprep.subr.mxu0 0.0
    %323 = vmatpush1.msra.mxu0 %v197
    %324 = vmatprep.subr.mxu0 0.0
    %325 = vmatpush1.msra.mxu0 %v198
    %326 = vmatprep.subr.mxu0 0.0
    %327 = vmatpush1.msra.mxu0 %v199
    %328 = vmatprep.subr.mxu0 0.0
    %329 = vmatpush1.msra.mxu0 %v200
    %330 = vmatprep.subr.mxu0 0.0
    %331 = vmatpush1.msra.mxu0 %v201
    %332 = vmatprep.subr.mxu0 0.0
    %333 = vmatpush1.msra.mxu0 %v202
    %334 = vmatprep.subr.mxu0 0.0
    %335 = vmatpush1.msra.mxu0 %v203
    %336 = vmatprep.subr.mxu0 0.0
    %337 = vmatpush1.msra.mxu0 %v204
    %338 = vmatprep.subr.mxu0 0.0
    %339 = vmatpush1.msra.mxu0 %v205
    %340 = vmatprep.subr.mxu0 0.0
    %341 = vmatpush1.msra.mxu0 0.0
    %342 = vmatprep.subr.mxu0 0.0
    %343 = vmatpush1.msra.mxu0 0.0
    %344 = vmatprep.subr.mxu0 0.0
    %345 = vmatpush1.msra.mxu0 0.0
    %346 = vmatprep.subr.mxu0 0.0
    %347 = vmatpush1.msra.mxu0 0.0
    %348 = vmatprep.subr.mxu0 0.0
    %349 = vmatpush1.msra.mxu0 0.0
    %350 = vmatprep.subr.mxu0 0.0
    %351 = vmatpush1.msra.mxu0 0.0
    %352 = vmatprep.subr.mxu0 0.0
    %353 = vmatpush1.msra.mxu0 0.0
    %354 = vmatprep.subr.mxu0 0.0
    %355 = vmatpush1.msra.mxu0 0.0
    %356 = vmatprep.subr.mxu0 0.0
    %357 = vmatpush1.msra.mxu0 0.0
    %358 = vmatprep.subr.mxu0 0.0
    %359 = vmatpush1.msra.mxu0 0.0
    %360 = vmatprep.subr.mxu0 0.0
    %361 = vmatpush1.msra.mxu0 0.0
    %362 = vmatprep.subr.mxu0 0.0
    %363 = vmatpush1.msra.mxu0 0.0
    %364 = vmatprep.subr.mxu0 0.0
    %365 = vmatpush1.msra.mxu0 0.0
    %366 = vmatprep.subr.mxu0 0.0
    %367 = vmatpush1.msra.mxu0 0.0
    %368 = vmatprep.subr.mxu0 0.0
    %369 = vmatpush1.msra.mxu0 0.0
    %370 = vmatprep.subr.mxu0 0.0
    %371 = vmatpush1.msra.mxu0 0.0
    %372 = vmatprep.mubr.f32.mxu0 0.0
    %373 = vmatmul.mubr.f32.gmra.mrb[0].mxu0 %v165
    %v374 = vpop.f32.mrb[0].mxu0
    %v375 = vadd.f32 %v290, %v374
    %v376 = vpop.f32.mrb[0].mxu0
    %377 = vmatprep.mubr.f32.mxu0 0.0
    %378 = vmatmul.mubr.f32.gmra.mrb[0].mxu0 %v166
    %v379 = vpop.f32.mrb[0].mxu0
    %v380 = vadd.f32 %v295, %v379
    %v381 = vpop.f32.mrb[0].mxu0
    %382 = vmatprep.mubr.f32.mxu0 0.0
    %383 = vmatmul.mubr.f32.gmra.mrb[0].mxu0 %v167
    %v384 = vpop.f32.mrb[0].mxu0
    %v385 = vadd.f32 %v300, %v384
    %v386 = vpop.f32.mrb[0].mxu0
    %387 = vmatprep.mubr.f32.mxu0 0.0
    %388 = vmatmul.mubr.f32.gmra.mrb[0].mxu0 %v168
    %v389 = vpop.f32.mrb[0].mxu0
    %v390 = vadd.f32 %v305, %v389
    %v391 = vpop.f32.mrb[0].mxu0
    %392 = vdwg.mxu0
    %s393 = scalar_lea.vmem [#allocation2], 256
    %v394 = vld [vmem:[%s393] sm:$0xff]
    %v395 = vld [vmem:[%s393 + $0x8] sm:$0xff]
    %v396 = vld [vmem:[%s393 + $0x10] sm:$0xff]
    %v397 = vld [vmem:[%s393 + $0x18] sm:$0xff]
    %v398 = vld [vmem:[%s393 + $0x20] sm:$0xff]
    %v399 = vld [vmem:[%s393 + $0x28] sm:$0xff]
    %v400 = vld [vmem:[%s393 + $0x30] sm:$0xff]
    %v401 = vld [vmem:[%s393 + $0x38] sm:$0xff]
    %v402 = vld [vmem:[%s393 + $0x40] sm:$0xff]
    %v403 = vld [vmem:[%s393 + $0x48] sm:$0xff]
    %v404 = vld [vmem:[%s393 + $0x50] sm:$0xff]
    %v405 = vld [vmem:[%s393 + $0x58] sm:$0xff]
    %v406 = vld [vmem:[%s393 + $0x60] sm:$0xff]
    %v407 = vld [vmem:[%s393 + $0x68] sm:$0xff]
    %v408 = vld [vmem:[%s393 + $0x70] sm:$0xff]
    %v409 = vld [vmem:[%s393 + $0x78] sm:$0xff]
    %410 = vmatprep.subr.mxu0 0.0
    %411 = vmatpush1.msra.mxu0 %v394
    %412 = vmatprep.subr.mxu0 0.0
    %413 = vmatpush1.msra.mxu0 %v395
    %414 = vmatprep.subr.mxu0 0.0
    %415 = vmatpush1.msra.mxu0 %v396
    %416 = vmatprep.subr.mxu0 0.0
    %417 = vmatpush1.msra.mxu0 %v397
    %418 = vmatprep.subr.mxu0 0.0
    %419 = vmatpush1.msra.mxu0 %v398
    %420 = vmatprep.subr.mxu0 0.0
    %421 = vmatpush1.msra.mxu0 %v399
    %422 = vmatprep.subr.mxu0 0.0
    %423 = vmatpush1.msra.mxu0 %v400
    %424 = vmatprep.subr.mxu0 0.0
    %425 = vmatpush1.msra.mxu0 %v401
    %426 = vmatprep.subr.mxu0 0.0
    %427 = vmatpush1.msra.mxu0 %v402
    %428 = vmatprep.subr.mxu0 0.0
    %429 = vmatpush1.msra.mxu0 %v403
    %430 = vmatprep.subr.mxu0 0.0
    %431 = vmatpush1.msra.mxu0 %v404
    %432 = vmatprep.subr.mxu0 0.0
    %433 = vmatpush1.msra.mxu0 %v405
    %434 = vmatprep.subr.mxu0 0.0
    %435 = vmatpush1.msra.mxu0 %v406
    %436 = vmatprep.subr.mxu0 0.0
    %437 = vmatpush1.msra.mxu0 %v407
    %438 = vmatprep.subr.mxu0 0.0
    %439 = vmatpush1.msra.mxu0 %v408
    %440 = vmatprep.subr.mxu0 0.0
    %441 = vmatpush1.msra.mxu0 %v409
    %442 = vmatprep.subr.mxu0 0.0
    %443 = vmatpush1.msra.mxu0 0.0
    %444 = vmatprep.subr.mxu0 0.0
    %445 = vmatpush1.msra.mxu0 0.0
    %446 = vmatprep.subr.mxu0 0.0
    %447 = vmatpush1.msra.mxu0 0.0
    %448 = vmatprep.subr.mxu0 0.0
    %449 = vmatpush1.msra.mxu0 0.0
    %450 = vmatprep.subr.mxu0 0.0
    %451 = vmatpush1.msra.mxu0 0.0
    %452 = vmatprep.subr.mxu0 0.0
    %453 = vmatpush1.msra.mxu0 0.0
    %454 = vmatprep.subr.mxu0 0.0
    %455 = vmatpush1.msra.mxu0 0.0
    %456 = vmatprep.subr.mxu0 0.0
    %457 = vmatpush1.msra.mxu0 0.0
    %458 = vmatprep.subr.mxu0 0.0
    %459 = vmatpush1.msra.mxu0 0.0
    %460 = vmatprep.subr.mxu0 0.0
    %461 = vmatpush1.msra.mxu0 0.0
    %462 = vmatprep.subr.mxu0 0.0
    %463 = vmatpush1.msra.mxu0 0.0
    %464 = vmatprep.subr.mxu0 0.0
    %465 = vmatpush1.msra.mxu0 0.0
    %466 = vmatprep.subr.mxu0 0.0
    %467 = vmatpush1.msra.mxu0 0.0
    %468 = vmatprep.subr.mxu0 0.0
    %469 = vmatpush1.msra.mxu0 0.0
    %470 = vmatprep.subr.mxu0 0.0
    %471 = vmatpush1.msra.mxu0 0.0
    %472 = vmatprep.subr.mxu0 0.0
    %473 = vmatpush1.msra.mxu0 0.0
    %474 = vmatprep.mubr.f32.mxu0 0.0
    %475 = vmatmul.mubr.f32.gmra.mrb[0].mxu0 %v186
    %v476 = vpop.f32.mrb[0].mxu0
    %v477 = vadd.f32 0.0, %v476
    %v478 = vpop.f32.mrb[0].mxu0
    %479 = vmatprep.mubr.f32.mxu0 0.0
    %480 = vmatmul.mubr.f32.gmra.mrb[0].mxu0 %v187
    %v481 = vpop.f32.mrb[0].mxu0
    %v482 = vadd.f32 0.0, %v481
    %v483 = vpop.f32.mrb[0].mxu0
    %484 = vmatprep.mubr.f32.mxu0 0.0
    %485 = vmatmul.mubr.f32.gmra.mrb[0].mxu0 %v188
    %v486 = vpop.f32.mrb[0].mxu0
    %v487 = vadd.f32 0.0, %v486
    %v488 = vpop.f32.mrb[0].mxu0
    %489 = vmatprep.mubr.f32.mxu0 0.0
    %490 = vmatmul.mubr.f32.gmra.mrb[0].mxu0 %v189
    %v491 = vpop.f32.mrb[0].mxu0
    %v492 = vadd.f32 0.0, %v491
    %v493 = vpop.f32.mrb[0].mxu0
    %494 = vdwg.mxu0
    %v495 = vadd.f32 %v375, %v477
    %v496 = vadd.f32 %v380, %v482
    %v497 = vadd.f32 %v385, %v487
    %v498 = vadd.f32 %v390, %v492
    %v499 = vld [vmem:[%s2] sm:$0x1]
    %v501 = vlaneseq
    %v502 = vshrl.u32 %v501, 7
    %v503 = vsub.s32 0, %v502
    %v504 = vrot.slane %v499, %v503
    %v506 = vmul.f32 %v495, %v504
    %v507 = vmul.f32 %v496, %v504
    %v508 = vmul.f32 %v497, %v504
    %v509 = vmul.f32 %v498, %v504
    %v510 = vld [vmem:[%s3] sm:$0x1]
    %v512 = vlaneseq
    %v513 = vshrl.u32 %v512, 7
    %v514 = vsub.s32 0, %v513
    %v515 = vrot.slane %v510, %v514
    %v517 = vadd.f32 %v506, %v515
    %v518 = vadd.f32 %v507, %v515
    %v519 = vadd.f32 %v508, %v515
    %v520 = vadd.f32 %v509, %v515
    %v521 = vmax.f32 %v517, 0.0
    %v522 = vmax.f32 %v518, 0.0
    %v523 = vmax.f32 %v519, 0.0
    %v524 = vmax.f32 %v520, 0.0
    %v525 = vrot.slane %v521, 7
    %v526 = vrot.slane %v522, 7
    %v527 = vrot.slane %v523, 7
    %v528 = vrot.slane %v524, 7
    %v529 = vsel %vm152, %v527, %v528
    %v530 = vsel %vm152, %v526, %v527
    %v531 = vsel %vm152, %v525, %v526
    %v532 = vsel %vm152, %v528, %v525
    %v533 = vsel %vm161, %v532, 0.0
    %v534 = vsel %vm162, %v531, 0.0
    %v535 = vsel %vm163, %v530, 0.0
    %v536 = vsel %vm164, %v529, 0.0
    %v537 = vrot.slane %v521, 1
    %v538 = vrot.slane %v522, 1
    %v539 = vrot.slane %v523, 1
    %v540 = vrot.slane %v524, 1
    %v541 = vsel %vm173, %v539, %v540
    %v542 = vsel %vm173, %v538, %v539
    %v543 = vsel %vm173, %v537, %v538
    %v544 = vsel %vm173, %v540, %v537
    %v545 = vsel %vm182, %v543, 0.0
    %v546 = vsel %vm183, %v542, 0.0
    %v547 = vsel %vm184, %v541, 0.0
    %v548 = vsel %vm185, %v544, 0.0
    %v549 = vld [vmem:[#allocation5] sm:$0xff]
    %v550 = vld [vmem:[#allocation5 + $0x8] sm:$0xff]
    %v551 = vld [vmem:[#allocation5 + $0x10] sm:$0xff]
    %v552 = vld [vmem:[#allocation5 + $0x18] sm:$0xff]
    %v553 = vld [vmem:[#allocation5 + $0x20] sm:$0xff]
    %v554 = vld [vmem:[#allocation5 + $0x28] sm:$0xff]
    %v555 = vld [vmem:[#allocation5 + $0x30] sm:$0xff]
    %v556 = vld [vmem:[#allocation5 + $0x38] sm:$0xff]
    %v557 = vld [vmem:[#allocation5 + $0x40] sm:$0xff]
    %v558 = vld [vmem:[#allocation5 + $0x48] sm:$0xff]
    %v559 = vld [vmem:[#allocation5 + $0x50] sm:$0xff]
    %v560 = vld [vmem:[#allocation5 + $0x58] sm:$0xff]
    %v561 = vld [vmem:[#allocation5 + $0x60] sm:$0xff]
    %v562 = vld [vmem:[#allocation5 + $0x68] sm:$0xff]
    %v563 = vld [vmem:[#allocation5 + $0x70] sm:$0xff]
    %v564 = vld [vmem:[#allocation5 + $0x78] sm:$0xff]
    %s565 = scalar_lea.vmem [#allocation5], 128
    %v566 = vld [vmem:[%s565] sm:$0xff]
    %v567 = vld [vmem:[%s565 + $0x8] sm:$0xff]
    %v568 = vld [vmem:[%s565 + $0x10] sm:$0xff]
    %v569 = vld [vmem:[%s565 + $0x18] sm:$0xff]
    %v570 = vld [vmem:[%s565 + $0x20] sm:$0xff]
    %v571 = vld [vmem:[%s565 + $0x28] sm:$0xff]
    %v572 = vld [vmem:[%s565 + $0x30] sm:$0xff]
    %v573 = vld [vmem:[%s565 + $0x38] sm:$0xff]
    %v574 = vld [vmem:[%s565 + $0x40] sm:$0xff]
    %v575 = vld [vmem:[%s565 + $0x48] sm:$0xff]
    %v576 = vld [vmem:[%s565 + $0x50] sm:$0xff]
    %v577 = vld [vmem:[%s565 + $0x58] sm:$0xff]
    %v578 = vld [vmem:[%s565 + $0x60] sm:$0xff]
    %v579 = vld [vmem:[%s565 + $0x68] sm:$0xff]
    %v580 = vld [vmem:[%s565 + $0x70] sm:$0xff]
    %v581 = vld [vmem:[%s565 + $0x78] sm:$0xff]
    %582 = vmatprep.subr.mxu0 0.0
    %583 = vmatpush1.msra.mxu0 %v566
    %584 = vmatprep.subr.mxu0 0.0
    %585 = vmatpush1.msra.mxu0 %v567
    %586 = vmatprep.subr.mxu0 0.0
    %587 = vmatpush1.msra.mxu0 %v568
    %588 = vmatprep.subr.mxu0 0.0
    %589 = vmatpush1.msra.mxu0 %v569
    %590 = vmatprep.subr.mxu0 0.0
    %591 = vmatpush1.msra.mxu0 %v570
    %592 = vmatprep.subr.mxu0 0.0
    %593 = vmatpush1.msra.mxu0 %v571
    %594 = vmatprep.subr.mxu0 0.0
    %595 = vmatpush1.msra.mxu0 %v572
    %596 = vmatprep.subr.mxu0 0.0
    %597 = vmatpush1.msra.mxu0 %v573
    %598 = vmatprep.subr.mxu0 0.0
    %599 = vmatpush1.msra.mxu0 %v574
    %600 = vmatprep.subr.mxu0 0.0
    %601 = vmatpush1.msra.mxu0 %v575
    %602 = vmatprep.subr.mxu0 0.0
    %603 = vmatpush1.msra.mxu0 %v576
    %604 = vmatprep.subr.mxu0 0.0
    %605 = vmatpush1.msra.mxu0 %v577
    %606 = vmatprep.subr.mxu0 0.0
    %607 = vmatpush1.msra.mxu0 %v578
    %608 = vmatprep.subr.mxu0 0.0
    %609 = vmatpush1.msra.mxu0 %v579
    %610 = vmatprep.subr.mxu0 0.0
    %611 = vmatpush1.msra.mxu0 %v580
    %612 = vmatprep.subr.mxu0 0.0
    %613 = vmatpush1.msra.mxu0 %v581
    %614 = vmatprep.subr.mxu0 0.0
    %615 = vmatpush1.msra.mxu0 0.0
    %616 = vmatprep.subr.mxu0 0.0
    %617 = vmatpush1.msra.mxu0 0.0
    %618 = vmatprep.subr.mxu0 0.0
    %619 = vmatpush1.msra.mxu0 0.0
    %620 = vmatprep.subr.mxu0 0.0
    %621 = vmatpush1.msra.mxu0 0.0
    %622 = vmatprep.subr.mxu0 0.0
    %623 = vmatpush1.msra.mxu0 0.0
    %624 = vmatprep.subr.mxu0 0.0
    %625 = vmatpush1.msra.mxu0 0.0
    %626 = vmatprep.subr.mxu0 0.0
    %627 = vmatpush1.msra.mxu0 0.0
    %628 = vmatprep.subr.mxu0 0.0
    %629 = vmatpush1.msra.mxu0 0.0
    %630 = vmatprep.subr.mxu0 0.0
    %631 = vmatpush1.msra.mxu0 0.0
    %632 = vmatprep.subr.mxu0 0.0
    %633 = vmatpush1.msra.mxu0 0.0
    %634 = vmatprep.subr.mxu0 0.0
    %635 = vmatpush1.msra.mxu0 0.0
    %636 = vmatprep.subr.mxu0 0.0
    %637 = vmatpush1.msra.mxu0 0.0
    %638 = vmatprep.subr.mxu0 0.0
    %639 = vmatpush1.msra.mxu0 0.0
    %640 = vmatprep.subr.mxu0 0.0
    %641 = vmatpush1.msra.mxu0 0.0
    %642 = vmatprep.subr.mxu0 0.0
    %643 = vmatpush1.msra.mxu0 0.0
    %644 = vmatprep.subr.mxu0 0.0
    %645 = vmatpush1.msra.mxu0 0.0
    %646 = vmatprep.mubr.f32.mxu0 0.0
    %647 = vmatmul.mubr.f32.gmra.mrb[0].mxu0 %v521
    %v648 = vpop.f32.mrb[0].mxu0
    %v649 = vadd.f32 0.0, %v648
    %v650 = vpop.f32.mrb[0].mxu0
    %651 = vmatprep.mubr.f32.mxu0 0.0
    %652 = vmatmul.mubr.f32.gmra.mrb[0].mxu0 %v522
    %v653 = vpop.f32.mrb[0].mxu0
    %v654 = vadd.f32 0.0, %v653
    %v655 = vpop.f32.mrb[0].mxu0
    %656 = vmatprep.mubr.f32.mxu0 0.0
    %657 = vmatmul.mubr.f32.gmra.mrb[0].mxu0 %v523
    %v658 = vpop.f32.mrb[0].mxu0
    %v659 = vadd.f32 0.0, %v658
    %v660 = vpop.f32.mrb[0].mxu0
    %661 = vmatprep.mubr.f32.mxu0 0.0
    %662 = vmatmul.mubr.f32.gmra.mrb[0].mxu0 %v524
    %v663 = vpop.f32.mrb[0].mxu0
    %v664 = vadd.f32 0.0, %v663
    %v665 = vpop.f32.mrb[0].mxu0
    %666 = vdwg.mxu0
    %667 = vmatprep.subr.mxu0 0.0
    %668 = vmatpush1.msra.mxu0 %v549
    %669 = vmatprep.subr.mxu0 0.0
    %670 = vmatpush1.msra.mxu0 %v550
    %671 = vmatprep.subr.mxu0 0.0
    %672 = vmatpush1.msra.mxu0 %v551
    %673 = vmatprep.subr.mxu0 0.0
    %674 = vmatpush1.msra.mxu0 %v552
    %675 = vmatprep.subr.mxu0 0.0
    %676 = vmatpush1.msra.mxu0 %v553
    %677 = vmatprep.subr.mxu0 0.0
    %678 = vmatpush1.msra.mxu0 %v554
    %679 = vmatprep.subr.mxu0 0.0
    %680 = vmatpush1.msra.mxu0 %v555
    %681 = vmatprep.subr.mxu0 0.0
    %682 = vmatpush1.msra.mxu0 %v556
    %683 = vmatprep.subr.mxu0 0.0
    %684 = vmatpush1.msra.mxu0 %v557
    %685 = vmatprep.subr.mxu0 0.0
    %686 = vmatpush1.msra.mxu0 %v558
    %687 = vmatprep.subr.mxu0 0.0
    %688 = vmatpush1.msra.mxu0 %v559
    %689 = vmatprep.subr.mxu0 0.0
    %690 = vmatpush1.msra.mxu0 %v560
    %691 = vmatprep.subr.mxu0 0.0
    %692 = vmatpush1.msra.mxu0 %v561
    %693 = vmatprep.subr.mxu0 0.0
    %694 = vmatpush1.msra.mxu0 %v562
    %695 = vmatprep.subr.mxu0 0.0
    %696 = vmatpush1.msra.mxu0 %v563
    %697 = vmatprep.subr.mxu0 0.0
    %698 = vmatpush1.msra.mxu0 %v564
    %699 = vmatprep.subr.mxu0 0.0
    %700 = vmatpush1.msra.mxu0 0.0
    %701 = vmatprep.subr.mxu0 0.0
    %702 = vmatpush1.msra.mxu0 0.0
    %703 = vmatprep.subr.mxu0 0.0
    %704 = vmatpush1.msra.mxu0 0.0
    %705 = vmatprep.subr.mxu0 0.0
    %706 = vmatpush1.msra.mxu0 0.0
    %707 = vmatprep.subr.mxu0 0.0
    %708 = vmatpush1.msra.mxu0 0.0
    %709 = vmatprep.subr.mxu0 0.0
    %710 = vmatpush1.msra.mxu0 0.0
    %711 = vmatprep.subr.mxu0 0.0
    %712 = vmatpush1.msra.mxu0 0.0
    %713 = vmatprep.subr.mxu0 0.0
    %714 = vmatpush1.msra.mxu0 0.0
    %715 = vmatprep.subr.mxu0 0.0
    %716 = vmatpush1.msra.mxu0 0.0
    %717 = vmatprep.subr.mxu0 0.0
    %718 = vmatpush1.msra.mxu0 0.0
    %719 = vmatprep.subr.mxu0 0.0
    %720 = vmatpush1.msra.mxu0 0.0
    %721 = vmatprep.subr.mxu0 0.0
    %722 = vmatpush1.msra.mxu0 0.0
    %723 = vmatprep.subr.mxu0 0.0
    %724 = vmatpush1.msra.mxu0 0.0
    %725 = vmatprep.subr.mxu0 0.0
    %726 = vmatpush1.msra.mxu0 0.0
    %727 = vmatprep.subr.mxu0 0.0
    %728 = vmatpush1.msra.mxu0 0.0
    %729 = vmatprep.subr.mxu0 0.0
    %730 = vmatpush1.msra.mxu0 0.0
    %731 = vmatprep.mubr.f32.mxu0 0.0
    %732 = vmatmul.mubr.f32.gmra.mrb[0].mxu0 %v533
    %v733 = vpop.f32.mrb[0].mxu0
    %v734 = vadd.f32 %v649, %v733
    %v735 = vpop.f32.mrb[0].mxu0
    %736 = vmatprep.mubr.f32.mxu0 0.0
    %737 = vmatmul.mubr.f32.gmra.mrb[0].mxu0 %v534
    %v738 = vpop.f32.mrb[0].mxu0
    %v739 = vadd.f32 %v654, %v738
    %v740 = vpop.f32.mrb[0].mxu0
    %741 = vmatprep.mubr.f32.mxu0 0.0
    %742 = vmatmul.mubr.f32.gmra.mrb[0].mxu0 %v535
    %v743 = vpop.f32.mrb[0].mxu0
    %v744 = vadd.f32 %v659, %v743
    %v745 = vpop.f32.mrb[0].mxu0
    %746 = vmatprep.mubr.f32.mxu0 0.0
    %747 = vmatmul.mubr.f32.gmra.mrb[0].mxu0 %v536
    %v748 = vpop.f32.mrb[0].mxu0
    %v749 = vadd.f32 %v664, %v748
    %v750 = vpop.f32.mrb[0].mxu0
    %751 = vdwg.mxu0
    %s752 = scalar_lea.vmem [#allocation5], 256
    %v753 = vld [vmem:[%s752] sm:$0xff]
    %v754 = vld [vmem:[%s752 + $0x8] sm:$0xff]
    %v755 = vld [vmem:[%s752 + $0x10] sm:$0xff]
    %v756 = vld [vmem:[%s752 + $0x18] sm:$0xff]
    %v757 = vld [vmem:[%s752 + $0x20] sm:$0xff]
    %v758 = vld [vmem:[%s752 + $0x28] sm:$0xff]
    %v759 = vld [vmem:[%s752 + $0x30] sm:$0xff]
    %v760 = vld [vmem:[%s752 + $0x38] sm:$0xff]
    %v761 = vld [vmem:[%s752 + $0x40] sm:$0xff]
    %v762 = vld [vmem:[%s752 + $0x48] sm:$0xff]
    %v763 = vld [vmem:[%s752 + $0x50] sm:$0xff]
    %v764 = vld [vmem:[%s752 + $0x58] sm:$0xff]
    %v765 = vld [vmem:[%s752 + $0x60] sm:$0xff]
    %v766 = vld [vmem:[%s752 + $0x68] sm:$0xff]
    %v767 = vld [vmem:[%s752 + $0x70] sm:$0xff]
    %v768 = vld [vmem:[%s752 + $0x78] sm:$0xff]
    %769 = vmatprep.subr.mxu0 0.0
    %770 = vmatpush1.msra.mxu0 %v753
    %771 = vmatprep.subr.mxu0 0.0
    %772 = vmatpush1.msra.mxu0 %v754
    %773 = vmatprep.subr.mxu0 0.0
    %774 = vmatpush1.msra.mxu0 %v755
    %775 = vmatprep.subr.mxu0 0.0
    %776 = vmatpush1.msra.mxu0 %v756
    %777 = vmatprep.subr.mxu0 0.0
    %778 = vmatpush1.msra.mxu0 %v757
    %779 = vmatprep.subr.mxu0 0.0
    %780 = vmatpush1.msra.mxu0 %v758
    %781 = vmatprep.subr.mxu0 0.0
    %782 = vmatpush1.msra.mxu0 %v759
    %783 = vmatprep.subr.mxu0 0.0
    %784 = vmatpush1.msra.mxu0 %v760
    %785 = vmatprep.subr.mxu0 0.0
    %786 = vmatpush1.msra.mxu0 %v761
    %787 = vmatprep.subr.mxu0 0.0
    %788 = vmatpush1.msra.mxu0 %v762
    %789 = vmatprep.subr.mxu0 0.0
    %790 = vmatpush1.msra.mxu0 %v763
    %791 = vmatprep.subr.mxu0 0.0
    %792 = vmatpush1.msra.mxu0 %v764
    %793 = vmatprep.subr.mxu0 0.0
    %794 = vmatpush1.msra.mxu0 %v765
    %795 = vmatprep.subr.mxu0 0.0
    %796 = vmatpush1.msra.mxu0 %v766
    %797 = vmatprep.subr.mxu0 0.0
    %798 = vmatpush1.msra.mxu0 %v767
    %799 = vmatprep.subr.mxu0 0.0
    %800 = vmatpush1.msra.mxu0 %v768
    %801 = vmatprep.subr.mxu0 0.0
    %802 = vmatpush1.msra.mxu0 0.0
    %803 = vmatprep.subr.mxu0 0.0
    %804 = vmatpush1.msra.mxu0 0.0
    %805 = vmatprep.subr.mxu0 0.0
    %806 = vmatpush1.msra.mxu0 0.0
    %807 = vmatprep.subr.mxu0 0.0
    %808 = vmatpush1.msra.mxu0 0.0
    %809 = vmatprep.subr.mxu0 0.0
    %810 = vmatpush1.msra.mxu0 0.0
    %811 = vmatprep.subr.mxu0 0.0
    %812 = vmatpush1.msra.mxu0 0.0
    %813 = vmatprep.subr.mxu0 0.0
    %814 = vmatpush1.msra.mxu0 0.0
    %815 = vmatprep.subr.mxu0 0.0
    %816 = vmatpush1.msra.mxu0 0.0
    %817 = vmatprep.subr.mxu0 0.0
    %818 = vmatpush1.msra.mxu0 0.0
    %819 = vmatprep.subr.mxu0 0.0
    %820 = vmatpush1.msra.mxu0 0.0
    %821 = vmatprep.subr.mxu0 0.0
    %822 = vmatpush1.msra.mxu0 0.0
    %823 = vmatprep.subr.mxu0 0.0
    %824 = vmatpush1.msra.mxu0 0.0
    %825 = vmatprep.subr.mxu0 0.0
    %826 = vmatpush1.msra.mxu0 0.0
    %827 = vmatprep.subr.mxu0 0.0
    %828 = vmatpush1.msra.mxu0 0.0
    %829 = vmatprep.subr.mxu0 0.0
    %830 = vmatpush1.msra.mxu0 0.0
    %831 = vmatprep.subr.mxu0 0.0
    %832 = vmatpush1.msra.mxu0 0.0
    %833 = vmatprep.mubr.f32.mxu0 0.0
    %834 = vmatmul.mubr.f32.gmra.mrb[0].mxu0 %v545
    %v835 = vpop.f32.mrb[0].mxu0
    %v836 = vadd.f32 0.0, %v835
    %v837 = vpop.f32.mrb[0].mxu0
    %838 = vmatprep.mubr.f32.mxu0 0.0
    %839 = vmatmul.mubr.f32.gmra.mrb[0].mxu0 %v546
    %v840 = vpop.f32.mrb[0].mxu0
    %v841 = vadd.f32 0.0, %v840
    %v842 = vpop.f32.mrb[0].mxu0
    %843 = vmatprep.mubr.f32.mxu0 0.0
    %844 = vmatmul.mubr.f32.gmra.mrb[0].mxu0 %v547
    %v845 = vpop.f32.mrb[0].mxu0
    %v846 = vadd.f32 0.0, %v845
    %v847 = vpop.f32.mrb[0].mxu0
    %848 = vmatprep.mubr.f32.mxu0 0.0
    %849 = vmatmul.mubr.f32.gmra.mrb[0].mxu0 %v548
    %v850 = vpop.f32.mrb[0].mxu0
    %v851 = vadd.f32 0.0, %v850
    %v852 = vpop.f32.mrb[0].mxu0
    %853 = vdwg.mxu0
    %v854 = vadd.f32 %v734, %v836
    %v855 = vadd.f32 %v739, %v841
    %v856 = vadd.f32 %v744, %v846
    %v857 = vadd.f32 %v749, %v851
    %v858 = vld [vmem:[%s5] sm:$0x1]
    %v860 = vlaneseq
    %v861 = vshrl.u32 %v860, 7
    %v862 = vsub.s32 0, %v861
    %v863 = vrot.slane %v858, %v862
    %v865 = vmul.f32 %v854, %v863
    %v866 = vmul.f32 %v855, %v863
    %v867 = vmul.f32 %v856, %v863
    %v868 = vmul.f32 %v857, %v863
    %v869 = vld [vmem:[%s6] sm:$0x1]
    %v871 = vlaneseq
    %v872 = vshrl.u32 %v871, 7
    %v873 = vsub.s32 0, %v872
    %v874 = vrot.slane %v869, %v873
    %v876 = vadd.f32 %v865, %v874
    %v877 = vadd.f32 %v866, %v874
    %v878 = vadd.f32 %v867, %v874
    %v879 = vadd.f32 %v868, %v874
    %v880 = vmax.f32 %v876, 0.0
    %v881 = vmax.f32 %v877, 0.0
    %v882 = vmax.f32 %v878, 0.0
    %v883 = vmax.f32 %v879, 0.0
    %v884 = vrot.slane %v880, 7
    %v885 = vrot.slane %v881, 7
    %v886 = vrot.slane %v882, 7
    %v887 = vrot.slane %v883, 7
    %v888 = vsel %vm152, %v886, %v887
    %v889 = vsel %vm152, %v885, %v886
    %v890 = vsel %vm152, %v884, %v885
    %v891 = vsel %vm152, %v887, %v884
    %v892 = vsel %vm161, %v891, 0.0
    %v893 = vsel %vm162, %v890, 0.0
    %v894 = vsel %vm163, %v889, 0.0
    %v895 = vsel %vm164, %v888, 0.0
    %v896 = vrot.slane %v880, 1
    %v897 = vrot.slane %v881, 1
    %v898 = vrot.slane %v882, 1
    %v899 = vrot.slane %v883, 1
    %v900 = vsel %vm173, %v898, %v899
    %v901 = vsel %vm173, %v897, %v898
    %v902 = vsel %vm173, %v896, %v897
    %v903 = vsel %vm173, %v899, %v896
    %v904 = vsel %vm182, %v902, 0.0
    %v905 = vsel %vm183, %v901, 0.0
    %v906 = vsel %vm184, %v900, 0.0
    %v907 = vsel %vm185, %v903, 0.0
    %v908 = vld [vmem:[#allocation7] sm:$0xff]
    %v909 = vld [vmem:[#allocation7 + $0x8] sm:$0xff]
    %v910 = vld [vmem:[#allocation7 + $0x10] sm:$0xff]
    %v911 = vld [vmem:[#allocation7 + $0x18] sm:$0xff]
    %v912 = vld [vmem:[#allocation7 + $0x20] sm:$0xff]
    %v913 = vld [vmem:[#allocation7 + $0x28] sm:$0xff]
    %v914 = vld [vmem:[#allocation7 + $0x30] sm:$0xff]
    %v915 = vld [vmem:[#allocation7 + $0x38] sm:$0xff]
    %v916 = vld [vmem:[#allocation7 + $0x40] sm:$0xff]
    %v917 = vld [vmem:[#allocation7 + $0x48] sm:$0xff]
    %v918 = vld [vmem:[#allocation7 + $0x50] sm:$0xff]
    %v919 = vld [vmem:[#allocation7 + $0x58] sm:$0xff]
    %v920 = vld [vmem:[#allocation7 + $0x60] sm:$0xff]
    %v921 = vld [vmem:[#allocation7 + $0x68] sm:$0xff]
    %v922 = vld [vmem:[#allocation7 + $0x70] sm:$0xff]
    %v923 = vld [vmem:[#allocation7 + $0x78] sm:$0xff]
    %s924 = scalar_lea.vmem [#allocation7], 128
    %v925 = vld [vmem:[%s924] sm:$0xff]
    %v926 = vld [vmem:[%s924 + $0x8] sm:$0xff]
    %v927 = vld [vmem:[%s924 + $0x10] sm:$0xff]
    %v928 = vld [vmem:[%s924 + $0x18] sm:$0xff]
    %v929 = vld [vmem:[%s924 + $0x20] sm:$0xff]
    %v930 = vld [vmem:[%s924 + $0x28] sm:$0xff]
    %v931 = vld [vmem:[%s924 + $0x30] sm:$0xff]
    %v932 = vld [vmem:[%s924 + $0x38] sm:$0xff]
    %v933 = vld [vmem:[%s924 + $0x40] sm:$0xff]
    %v934 = vld [vmem:[%s924 + $0x48] sm:$0xff]
    %v935 = vld [vmem:[%s924 + $0x50] sm:$0xff]
    %v936 = vld [vmem:[%s924 + $0x58] sm:$0xff]
    %v937 = vld [vmem:[%s924 + $0x60] sm:$0xff]
    %v938 = vld [vmem:[%s924 + $0x68] sm:$0xff]
    %v939 = vld [vmem:[%s924 + $0x70] sm:$0xff]
    %v940 = vld [vmem:[%s924 + $0x78] sm:$0xff]
    %941 = vmatprep.subr.mxu0 0.0
    %942 = vmatpush1.msra.mxu0 %v925
    %943 = vmatprep.subr.mxu0 0.0
    %944 = vmatpush1.msra.mxu0 %v926
    %945 = vmatprep.subr.mxu0 0.0
    %946 = vmatpush1.msra.mxu0 %v927
    %947 = vmatprep.subr.mxu0 0.0
    %948 = vmatpush1.msra.mxu0 %v928
    %949 = vmatprep.subr.mxu0 0.0
    %950 = vmatpush1.msra.mxu0 %v929
    %951 = vmatprep.subr.mxu0 0.0
    %952 = vmatpush1.msra.mxu0 %v930
    %953 = vmatprep.subr.mxu0 0.0
    %954 = vmatpush1.msra.mxu0 %v931
    %955 = vmatprep.subr.mxu0 0.0
    %956 = vmatpush1.msra.mxu0 %v932
    %957 = vmatprep.subr.mxu0 0.0
    %958 = vmatpush1.msra.mxu0 %v933
    %959 = vmatprep.subr.mxu0 0.0
    %960 = vmatpush1.msra.mxu0 %v934
    %961 = vmatprep.subr.mxu0 0.0
    %962 = vmatpush1.msra.mxu0 %v935
    %963 = vmatprep.subr.mxu0 0.0
    %964 = vmatpush1.msra.mxu0 %v936
    %965 = vmatprep.subr.mxu0 0.0
    %966 = vmatpush1.msra.mxu0 %v937
    %967 = vmatprep.subr.mxu0 0.0
    %968 = vmatpush1.msra.mxu0 %v938
    %969 = vmatprep.subr.mxu0 0.0
    %970 = vmatpush1.msra.mxu0 %v939
    %971 = vmatprep.subr.mxu0 0.0
    %972 = vmatpush1.msra.mxu0 %v940
    %973 = vmatprep.subr.mxu0 0.0
    %974 = vmatpush1.msra.mxu0 0.0
    %975 = vmatprep.subr.mxu0 0.0
    %976 = vmatpush1.msra.mxu0 0.0
    %977 = vmatprep.subr.mxu0 0.0
    %978 = vmatpush1.msra.mxu0 0.0
    %979 = vmatprep.subr.mxu0 0.0
    %980 = vmatpush1.msra.mxu0 0.0
    %981 = vmatprep.subr.mxu0 0.0
    %982 = vmatpush1.msra.mxu0 0.0
    %983 = vmatprep.subr.mxu0 0.0
    %984 = vmatpush1.msra.mxu0 0.0
    %985 = vmatprep.subr.mxu0 0.0
    %986 = vmatpush1.msra.mxu0 0.0
    %987 = vmatprep.subr.mxu0 0.0
    %988 = vmatpush1.msra.mxu0 0.0
    %989 = vmatprep.subr.mxu0 0.0
    %990 = vmatpush1.msra.mxu0 0.0
    %991 = vmatprep.subr.mxu0 0.0
    %992 = vmatpush1.msra.mxu0 0.0
    %993 = vmatprep.subr.mxu0 0.0
    %994 = vmatpush1.msra.mxu0 0.0
    %995 = vmatprep.subr.mxu0 0.0
    %996 = vmatpush1.msra.mxu0 0.0
    %997 = vmatprep.subr.mxu0 0.0
    %998 = vmatpush1.msra.mxu0 0.0
    %999 = vmatprep.subr.mxu0 0.0
    %1000 = vmatpush1.msra.mxu0 0.0
    %1001 = vmatprep.subr.mxu0 0.0
    %1002 = vmatpush1.msra.mxu0 0.0
    %1003 = vmatprep.subr.mxu0 0.0
    %1004 = vmatpush1.msra.mxu0 0.0
    %1005 = vmatprep.mubr.f32.mxu0 0.0
    %1006 = vmatmul.mubr.f32.gmra.mrb[0].mxu0 %v880
    %v1007 = vpop.f32.mrb[0].mxu0
    %v1008 = vadd.f32 0.0, %v1007
    %v1009 = vpop.f32.mrb[0].mxu0
    %1010 = vmatprep.mubr.f32.mxu0 0.0
    %1011 = vmatmul.mubr.f32.gmra.mrb[0].mxu0 %v881
    %v1012 = vpop.f32.mrb[0].mxu0
    %v1013 = vadd.f32 0.0, %v1012
    %v1014 = vpop.f32.mrb[0].mxu0
    %1015 = vmatprep.mubr.f32.mxu0 0.0
    %1016 = vmatmul.mubr.f32.gmra.mrb[0].mxu0 %v882
    %v1017 = vpop.f32.mrb[0].mxu0
    %v1018 = vadd.f32 0.0, %v1017
    %v1019 = vpop.f32.mrb[0].mxu0
    %1020 = vmatprep.mubr.f32.mxu0 0.0
    %1021 = vmatmul.mubr.f32.gmra.mrb[0].mxu0 %v883
    %v1022 = vpop.f32.mrb[0].mxu0
    %v1023 = vadd.f32 0.0, %v1022
    %v1024 = vpop.f32.mrb[0].mxu0
    %1025 = vdwg.mxu0
    %1026 = vmatprep.subr.mxu0 0.0
    %1027 = vmatpush1.msra.mxu0 %v908
    %1028 = vmatprep.subr.mxu0 0.0
    %1029 = vmatpush1.msra.mxu0 %v909
    %1030 = vmatprep.subr.mxu0 0.0
    %1031 = vmatpush1.msra.mxu0 %v910
    %1032 = vmatprep.subr.mxu0 0.0
    %1033 = vmatpush1.msra.mxu0 %v911
    %1034 = vmatprep.subr.mxu0 0.0
    %1035 = vmatpush1.msra.mxu0 %v912
    %1036 = vmatprep.subr.mxu0 0.0
    %1037 = vmatpush1.msra.mxu0 %v913
    %1038 = vmatprep.subr.mxu0 0.0
    %1039 = vmatpush1.msra.mxu0 %v914
    %1040 = vmatprep.subr.mxu0 0.0
    %1041 = vmatpush1.msra.mxu0 %v915
    %1042 = vmatprep.subr.mxu0 0.0
    %1043 = vmatpush1.msra.mxu0 %v916
    %1044 = vmatprep.subr.mxu0 0.0
    %1045 = vmatpush1.msra.mxu0 %v917
    %1046 = vmatprep.subr.mxu0 0.0
    %1047 = vmatpush1.msra.mxu0 %v918
    %1048 = vmatprep.subr.mxu0 0.0
    %1049 = vmatpush1.msra.mxu0 %v919
    %1050 = vmatprep.subr.mxu0 0.0
    %1051 = vmatpush1.msra.mxu0 %v920
    %1052 = vmatprep.subr.mxu0 0.0
    %1053 = vmatpush1.msra.mxu0 %v921
    %1054 = vmatprep.subr.mxu0 0.0
    %1055 = vmatpush1.msra.mxu0 %v922
    %1056 = vmatprep.subr.mxu0 0.0
    %1057 = vmatpush1.msra.mxu0 %v923
    %1058 = vmatprep.subr.mxu0 0.0
    %1059 = vmatpush1.msra.mxu0 0.0
    %1060 = vmatprep.subr.mxu0 0.0
    %1061 = vmatpush1.msra.mxu0 0.0
    %1062 = vmatprep.subr.mxu0 0.0
    %1063 = vmatpush1.msra.mxu0 0.0
    %1064 = vmatprep.subr.mxu0 0.0
    %1065 = vmatpush1.msra.mxu0 0.0
    %1066 = vmatprep.subr.mxu0 0.0
    %1067 = vmatpush1.msra.mxu0 0.0
    %1068 = vmatprep.subr.mxu0 0.0
    %1069 = vmatpush1.msra.mxu0 0.0
    %1070 = vmatprep.subr.mxu0 0.0
    %1071 = vmatpush1.msra.mxu0 0.0
    %1072 = vmatprep.subr.mxu0 0.0
    %1073 = vmatpush1.msra.mxu0 0.0
    %1074 = vmatprep.subr.mxu0 0.0
    %1075 = vmatpush1.msra.mxu0 0.0
    %1076 = vmatprep.subr.mxu0 0.0
    %1077 = vmatpush1.msra.mxu0 0.0
    %1078 = vmatprep.subr.mxu0 0.0
    %1079 = vmatpush1.msra.mxu0 0.0
    %1080 = vmatprep.subr.mxu0 0.0
    %1081 = vmatpush1.msra.mxu0 0.0
    %1082 = vmatprep.subr.mxu0 0.0
    %1083 = vmatpush1.msra.mxu0 0.0
    %1084 = vmatprep.subr.mxu0 0.0
    %1085 = vmatpush1.msra.mxu0 0.0
    %1086 = vmatprep.subr.mxu0 0.0
    %1087 = vmatpush1.msra.mxu0 0.0
    %1088 = vmatprep.subr.mxu0 0.0
    %1089 = vmatpush1.msra.mxu0 0.0
    %1090 = vmatprep.mubr.f32.mxu0 0.0
    %1091 = vmatmul.mubr.f32.gmra.mrb[0].mxu0 %v892
    %v1092 = vpop.f32.mrb[0].mxu0
    %v1093 = vadd.f32 %v1008, %v1092
    %v1094 = vpop.f32.mrb[0].mxu0
    %1095 = vmatprep.mubr.f32.mxu0 0.0
    %1096 = vmatmul.mubr.f32.gmra.mrb[0].mxu0 %v893
    %v1097 = vpop.f32.mrb[0].mxu0
    %v1098 = vadd.f32 %v1013, %v1097
    %v1099 = vpop.f32.mrb[0].mxu0
    %1100 = vmatprep.mubr.f32.mxu0 0.0
    %1101 = vmatmul.mubr.f32.gmra.mrb[0].mxu0 %v894
    %v1102 = vpop.f32.mrb[0].mxu0
    %v1103 = vadd.f32 %v1018, %v1102
    %v1104 = vpop.f32.mrb[0].mxu0
    %1105 = vmatprep.mubr.f32.mxu0 0.0
    %1106 = vmatmul.mubr.f32.gmra.mrb[0].mxu0 %v895
    %v1107 = vpop.f32.mrb[0].mxu0
    %v1108 = vadd.f32 %v1023, %v1107
    %v1109 = vpop.f32.mrb[0].mxu0
    %1110 = vdwg.mxu0
    %s1111 = scalar_lea.vmem [#allocation7], 256
    %v1112 = vld [vmem:[%s1111] sm:$0xff]
    %v1113 = vld [vmem:[%s1111 + $0x8] sm:$0xff]
    %v1114 = vld [vmem:[%s1111 + $0x10] sm:$0xff]
    %v1115 = vld [vmem:[%s1111 + $0x18] sm:$0xff]
    %v1116 = vld [vmem:[%s1111 + $0x20] sm:$0xff]
    %v1117 = vld [vmem:[%s1111 + $0x28] sm:$0xff]
    %v1118 = vld [vmem:[%s1111 + $0x30] sm:$0xff]
    %v1119 = vld [vmem:[%s1111 + $0x38] sm:$0xff]
    %v1120 = vld [vmem:[%s1111 + $0x40] sm:$0xff]
    %v1121 = vld [vmem:[%s1111 + $0x48] sm:$0xff]
    %v1122 = vld [vmem:[%s1111 + $0x50] sm:$0xff]
    %v1123 = vld [vmem:[%s1111 + $0x58] sm:$0xff]
    %v1124 = vld [vmem:[%s1111 + $0x60] sm:$0xff]
    %v1125 = vld [vmem:[%s1111 + $0x68] sm:$0xff]
    %v1126 = vld [vmem:[%s1111 + $0x70] sm:$0xff]
    %v1127 = vld [vmem:[%s1111 + $0x78] sm:$0xff]
    %1128 = vmatprep.subr.mxu0 0.0
    %1129 = vmatpush1.msra.mxu0 %v1112
    %1130 = vmatprep.subr.mxu0 0.0
    %1131 = vmatpush1.msra.mxu0 %v1113
    %1132 = vmatprep.subr.mxu0 0.0
    %1133 = vmatpush1.msra.mxu0 %v1114
    %1134 = vmatprep.subr.mxu0 0.0
    %1135 = vmatpush1.msra.mxu0 %v1115
    %1136 = vmatprep.subr.mxu0 0.0
    %1137 = vmatpush1.msra.mxu0 %v1116
    %1138 = vmatprep.subr.mxu0 0.0
    %1139 = vmatpush1.msra.mxu0 %v1117
    %1140 = vmatprep.subr.mxu0 0.0
    %1141 = vmatpush1.msra.mxu0 %v1118
    %1142 = vmatprep.subr.mxu0 0.0
    %1143 = vmatpush1.msra.mxu0 %v1119
    %1144 = vmatprep.subr.mxu0 0.0
    %1145 = vmatpush1.msra.mxu0 %v1120
    %1146 = vmatprep.subr.mxu0 0.0
    %1147 = vmatpush1.msra.mxu0 %v1121
    %1148 = vmatprep.subr.mxu0 0.0
    %1149 = vmatpush1.msra.mxu0 %v1122
    %1150 = vmatprep.subr.mxu0 0.0
    %1151 = vmatpush1.msra.mxu0 %v1123
    %1152 = vmatprep.subr.mxu0 0.0
    %1153 = vmatpush1.msra.mxu0 %v1124
    %1154 = vmatprep.subr.mxu0 0.0
    %1155 = vmatpush1.msra.mxu0 %v1125
    %1156 = vmatprep.subr.mxu0 0.0
    %1157 = vmatpush1.msra.mxu0 %v1126
    %1158 = vmatprep.subr.mxu0 0.0
    %1159 = vmatpush1.msra.mxu0 %v1127
    %1160 = vmatprep.subr.mxu0 0.0
    %1161 = vmatpush1.msra.mxu0 0.0
    %1162 = vmatprep.subr.mxu0 0.0
    %1163 = vmatpush1.msra.mxu0 0.0
    %1164 = vmatprep.subr.mxu0 0.0
    %1165 = vmatpush1.msra.mxu0 0.0
    %1166 = vmatprep.subr.mxu0 0.0
    %1167 = vmatpush1.msra.mxu0 0.0
    %1168 = vmatprep.subr.mxu0 0.0
    %1169 = vmatpush1.msra.mxu0 0.0
    %1170 = vmatprep.subr.mxu0 0.0
    %1171 = vmatpush1.msra.mxu0 0.0
    %1172 = vmatprep.subr.mxu0 0.0
    %1173 = vmatpush1.msra.mxu0 0.0
    %1174 = vmatprep.subr.mxu0 0.0
    %1175 = vmatpush1.msra.mxu0 0.0
    %1176 = vmatprep.subr.mxu0 0.0
    %1177 = vmatpush1.msra.mxu0 0.0
    %1178 = vmatprep.subr.mxu0 0.0
    %1179 = vmatpush1.msra.mxu0 0.0
    %1180 = vmatprep.subr.mxu0 0.0
    %1181 = vmatpush1.msra.mxu0 0.0
    %1182 = vmatprep.subr.mxu0 0.0
    %1183 = vmatpush1.msra.mxu0 0.0
    %1184 = vmatprep.subr.mxu0 0.0
    %1185 = vmatpush1.msra.mxu0 0.0
    %1186 = vmatprep.subr.mxu0 0.0
    %1187 = vmatpush1.msra.mxu0 0.0
    %1188 = vmatprep.subr.mxu0 0.0
    %1189 = vmatpush1.msra.mxu0 0.0
    %1190 = vmatprep.subr.mxu0 0.0
    %1191 = vmatpush1.msra.mxu0 0.0
    %1192 = vmatprep.mubr.f32.mxu0 0.0
    %1193 = vmatmul.mubr.f32.gmra.mrb[0].mxu0 %v904
    %v1194 = vpop.f32.mrb[0].mxu0
    %v1195 = vadd.f32 0.0, %v1194
    %v1196 = vpop.f32.mrb[0].mxu0
    %1197 = vmatprep.mubr.f32.mxu0 0.0
    %1198 = vmatmul.mubr.f32.gmra.mrb[0].mxu0 %v905
    %v1199 = vpop.f32.mrb[0].mxu0
    %v1200 = vadd.f32 0.0, %v1199
    %v1201 = vpop.f32.mrb[0].mxu0
    %1202 = vmatprep.mubr.f32.mxu0 0.0
    %1203 = vmatmul.mubr.f32.gmra.mrb[0].mxu0 %v906
    %v1204 = vpop.f32.mrb[0].mxu0
    %v1205 = vadd.f32 0.0, %v1204
    %v1206 = vpop.f32.mrb[0].mxu0
    %1207 = vmatprep.mubr.f32.mxu0 0.0
    %1208 = vmatmul.mubr.f32.gmra.mrb[0].mxu0 %v907
    %v1209 = vpop.f32.mrb[0].mxu0
    %v1210 = vadd.f32 0.0, %v1209
    %v1211 = vpop.f32.mrb[0].mxu0
    %1212 = vdwg.mxu0
    %v1213 = vadd.f32 %v1093, %v1195
    %v1214 = vadd.f32 %v1098, %v1200
    %v1215 = vadd.f32 %v1103, %v1205
    %v1216 = vadd.f32 %v1108, %v1210
    %v1217 = vld [vmem:[%s8] sm:$0x1]
    %v1219 = vlaneseq
    %v1220 = vshrl.u32 %v1219, 7
    %v1221 = vsub.s32 0, %v1220
    %v1222 = vrot.slane %v1217, %v1221
    %v1224 = vmul.f32 %v1213, %v1222
    %v1225 = vmul.f32 %v1214, %v1222
    %v1226 = vmul.f32 %v1215, %v1222
    %v1227 = vmul.f32 %v1216, %v1222
    %v1228 = vld [vmem:[%s9] sm:$0x1]
    %v1230 = vlaneseq
    %v1231 = vshrl.u32 %v1230, 7
    %v1232 = vsub.s32 0, %v1231
    %v1233 = vrot.slane %v1228, %v1232
    %v1235 = vadd.f32 %v1224, %v1233
    %v1236 = vadd.f32 %v1225, %v1233
    %v1237 = vadd.f32 %v1226, %v1233
    %v1238 = vadd.f32 %v1227, %v1233
    %v1239 = vmax.f32 %v1235, 0.0
    %v1240 = vmax.f32 %v1236, 0.0
    %v1241 = vmax.f32 %v1237, 0.0
    %v1242 = vmax.f32 %v1238, 0.0
    %v1243 = vld [vmem:[%s10] sm:$0xff]
    %v1244 = vld [vmem:[%s10 + $0x8] sm:$0xff]
    %v1245 = vld [vmem:[%s10 + $0x10] sm:$0xff]
    %v1246 = vld [vmem:[%s10 + $0x18] sm:$0xff]
    %v1247 = vld [vmem:[%s10 + $0x20] sm:$0xff]
    %v1248 = vld [vmem:[%s10 + $0x28] sm:$0xff]
    %v1249 = vld [vmem:[%s10 + $0x30] sm:$0xff]
    %v1250 = vld [vmem:[%s10 + $0x38] sm:$0xff]
    %v1251 = vld [vmem:[%s10 + $0x40] sm:$0xff]
    %v1252 = vld [vmem:[%s10 + $0x48] sm:$0xff]
    %v1253 = vld [vmem:[%s10 + $0x50] sm:$0xff]
    %v1254 = vld [vmem:[%s10 + $0x58] sm:$0xff]
    %v1255 = vld [vmem:[%s10 + $0x60] sm:$0xff]
    %v1256 = vld [vmem:[%s10 + $0x68] sm:$0xff]
    %v1257 = vld [vmem:[%s10 + $0x70] sm:$0xff]
    %v1258 = vld [vmem:[%s10 + $0x78] sm:$0xff]
    %v1259 = vld [vmem:[%s11] sm:$0x1]
    %v1261 = vlaneseq
    %v1262 = vshrl.u32 %v1261, 7
    %v1263 = vsub.s32 0, %v1262
    %v1264 = vrot.slane %v1259, %v1263
    %1266 = vmatprep.subr.mxu0 0.0
    %1267 = vmatpush1.msra.mxu0 %v1243
    %1268 = vmatprep.subr.mxu0 0.0
    %1269 = vmatpush1.msra.mxu0 %v1244
    %1270 = vmatprep.subr.mxu0 0.0
    %1271 = vmatpush1.msra.mxu0 %v1245
    %1272 = vmatprep.subr.mxu0 0.0
    %1273 = vmatpush1.msra.mxu0 %v1246
    %1274 = vmatprep.subr.mxu0 0.0
    %1275 = vmatpush1.msra.mxu0 %v1247
    %1276 = vmatprep.subr.mxu0 0.0
    %1277 = vmatpush1.msra.mxu0 %v1248
    %1278 = vmatprep.subr.mxu0 0.0
    %1279 = vmatpush1.msra.mxu0 %v1249
    %1280 = vmatprep.subr.mxu0 0.0
    %1281 = vmatpush1.msra.mxu0 %v1250
    %1282 = vmatprep.subr.mxu0 0.0
    %1283 = vmatpush1.msra.mxu0 %v1251
    %1284 = vmatprep.subr.mxu0 0.0
    %1285 = vmatpush1.msra.mxu0 %v1252
    %1286 = vmatprep.subr.mxu0 0.0
    %1287 = vmatpush1.msra.mxu0 %v1253
    %1288 = vmatprep.subr.mxu0 0.0
    %1289 = vmatpush1.msra.mxu0 %v1254
    %1290 = vmatprep.subr.mxu0 0.0
    %1291 = vmatpush1.msra.mxu0 %v1255
    %1292 = vmatprep.subr.mxu0 0.0
    %1293 = vmatpush1.msra.mxu0 %v1256
    %1294 = vmatprep.subr.mxu0 0.0
    %1295 = vmatpush1.msra.mxu0 %v1257
    %1296 = vmatprep.subr.mxu0 0.0
    %1297 = vmatpush1.msra.mxu0 %v1258
    %1298 = vmatprep.subr.mxu0 0.0
    %1299 = vmatpush1.msra.mxu0 0.0
    %1300 = vmatprep.subr.mxu0 0.0
    %1301 = vmatpush1.msra.mxu0 0.0
    %1302 = vmatprep.subr.mxu0 0.0
    %1303 = vmatpush1.msra.mxu0 0.0
    %1304 = vmatprep.subr.mxu0 0.0
    %1305 = vmatpush1.msra.mxu0 0.0
    %1306 = vmatprep.subr.mxu0 0.0
    %1307 = vmatpush1.msra.mxu0 0.0
    %1308 = vmatprep.subr.mxu0 0.0
    %1309 = vmatpush1.msra.mxu0 0.0
    %1310 = vmatprep.subr.mxu0 0.0
    %1311 = vmatpush1.msra.mxu0 0.0
    %1312 = vmatprep.subr.mxu0 0.0
    %1313 = vmatpush1.msra.mxu0 0.0
    %1314 = vmatprep.subr.mxu0 0.0
    %1315 = vmatpush1.msra.mxu0 0.0
    %1316 = vmatprep.subr.mxu0 0.0
    %1317 = vmatpush1.msra.mxu0 0.0
    %1318 = vmatprep.subr.mxu0 0.0
    %1319 = vmatpush1.msra.mxu0 0.0
    %1320 = vmatprep.subr.mxu0 0.0
    %1321 = vmatpush1.msra.mxu0 0.0
    %1322 = vmatprep.subr.mxu0 0.0
    %1323 = vmatpush1.msra.mxu0 0.0
    %1324 = vmatprep.subr.mxu0 0.0
    %1325 = vmatpush1.msra.mxu0 0.0
    %1326 = vmatprep.subr.mxu0 0.0
    %1327 = vmatpush1.msra.mxu0 0.0
    %1328 = vmatprep.subr.mxu0 0.0
    %1329 = vmatpush1.msra.mxu0 0.0
    %1330 = vmatprep.mubr.f32.mxu0 0.0
    %1331 = vmatmul.mubr.f32.gmra.mrb[0].mxu0 %v1239
    %v1332 = vpop.f32.mrb[0].mxu0
    %v1333 = vadd.f32 %v1264, %v1332
    %v1334 = vpop.f32.mrb[0].mxu0
    %1335 = vmatprep.mubr.f32.mxu0 0.0
    %1336 = vmatmul.mubr.f32.gmra.mrb[0].mxu0 %v1240
    %v1337 = vpop.f32.mrb[0].mxu0
    %v1338 = vadd.f32 %v1264, %v1337
    %v1339 = vpop.f32.mrb[0].mxu0
    %1340 = vmatprep.mubr.f32.mxu0 0.0
    %1341 = vmatmul.mubr.f32.gmra.mrb[0].mxu0 %v1241
    %v1342 = vpop.f32.mrb[0].mxu0
    %v1343 = vadd.f32 %v1264, %v1342
    %v1344 = vpop.f32.mrb[0].mxu0
    %1345 = vmatprep.mubr.f32.mxu0 0.0
    %1346 = vmatmul.mubr.f32.gmra.mrb[0].mxu0 %v1242
    %v1347 = vpop.f32.mrb[0].mxu0
    %v1348 = vadd.f32 %v1264, %v1347
    %v1349 = vpop.f32.mrb[0].mxu0
    %1350 = vdwg.mxu0
    %v1351 = vxor.u32 %v1333, 2147483648
    %v1352 = vxor.u32 %v1338, 2147483648
    %v1353 = vxor.u32 %v1343, 2147483648
    %v1354 = vxor.u32 %v1348, 2147483648
    %v1355 = vmul.f32 %v1351, 1.442695
    %v1356 = vpow.pop %v1355
    %v1357 = vmul.f32 %v1352, 1.442695
    %v1358 = vpow.pop %v1357
    %v1359 = vmul.f32 %v1353, 1.442695
    %v1360 = vpow.pop %v1359
    %v1361 = vmul.f32 %v1354, 1.442695
    %v1362 = vpow.pop %v1361
    %v1363 = vadd.f32 %v1356, 1.0
    %v1364 = vadd.f32 %v1358, 1.0
    %v1365 = vadd.f32 %v1360, 1.0
    %v1366 = vadd.f32 %v1362, 1.0
    %v1367 = vrcp.pop %v1363
    %v1368 = vmul.f32 1.0, %v1367
    %v1369 = vrcp.pop %v1364
    %v1370 = vmul.f32 1.0, %v1369
    %v1371 = vrcp.pop %v1365
    %v1372 = vmul.f32 1.0, %v1371
    %v1373 = vrcp.pop %v1366
    %v1374 = vmul.f32 1.0, %v1373
    %vm1375 = vcmask 261120
    %1376 = vst.msk [vmem:[#allocation8] sm:$0xff] %vm1375, %v1368
    %1377 = vst.msk [vmem:[#allocation8 + $0x8] sm:$0xff] %vm1375, %v1370
    %1378 = vst.msk [vmem:[#allocation8 + $0x10] sm:$0xff] %vm1375, %v1372
    %1379 = vst.msk [vmem:[#allocation8 + $0x18] sm:$0xff] %vm1375, %v1374
    // Predicated region
    $region62: #{tpu_custom_call.1} parent=1 // pred_check
      _
    $region63: #{tpu_custom_call.1} parent=1 // pred_check_branch
      %1381 = sbr.rel (0) target = $region65
    $region64: #{tpu_custom_call.1} parent=1 // pred_region
      %s1383 = ssub.s32 512, 512
      %1384 = vsyncadd [#allocation4], %s1383
      %s1385 = sshll.u32 [#allocation8], 4
      %s1386 = int_to_ptr.vmem [resolvable:$true] %s1385
      %1391 = dma.vmem_to_hbm [thread:$0]  %s1386, 512, %s12, [#allocation4], 128, 128, 8
    $region65: #{tpu_custom_call.1} parent=1 // pred_fallthru
      _
    // Predicated region
    $region66: #{tpu_custom_call.1} parent=1 // pred_check
      _
    $region67: #{tpu_custom_call.1} parent=1 // pred_check_branch
      %1393 = sbr.rel (0) target = $region69
    $region68: #{tpu_custom_call.1} parent=1 // pred_region
      %1394 = dma.done [#allocation4], 512
    $region69: #{tpu_custom_call.1} parent=1 // pred_fallthru
      _
    %1395 = vsyncpa [#allocation3], 1
    %1396 = vsyncpa [#allocation6], 1
    %1397 = vsyncpa [#allocation4], 1

</llo_original>
